<compile_context>
chip_gen: v7x
topology: tpu7x:2x2x1
jax: 0.10.0
libtpu: 0.0.40
codegen_flags: <defaults>
</compile_context>

<pallas_src>
import jax
import jax.numpy as jnp
from jax.experimental import pallas as pl
from jax.experimental.pallas import tpu as pltpu


def _round_up(x, m):
    return (x + m - 1) // m * m


def _point_head_kernel(fine_ref, coarse_ref,
                       w1f_ref, w1c_ref, w2h_ref, w2c_ref,
                       w3h_ref, w3c_ref, wph_ref, wpc_ref,
                       b1_ref, b2_ref, b3_ref, bp_ref,
                       out_ref):
    # Blocks are (1, C, tp); index [0] drops the batch axis.
    f = fine_ref[0].astype(jnp.bfloat16)      # (C_fine, tp)
    c = coarse_ref[0].astype(jnp.bfloat16)    # (K, tp)

    # fc1: relu(W1_fine @ fine + W1_coarse @ coarse + b1)   -> (F, tp)
    h = (jnp.dot(w1f_ref[...], f, preferred_element_type=jnp.float32)
         + jnp.dot(w1c_ref[...], c, preferred_element_type=jnp.float32)
         + b1_ref[...])
    h = jnp.maximum(h, 0.0).astype(jnp.bfloat16)

    # fc2: the coarse contribution is computed right before its add (no big
    # stacked intermediate kept live across the layers).
    h = (jnp.dot(w2h_ref[...], h, preferred_element_type=jnp.float32)
         + jnp.dot(w2c_ref[...], c, preferred_element_type=jnp.float32)
         + b2_ref[...])
    h = jnp.maximum(h, 0.0).astype(jnp.bfloat16)

    # fc3
    h = (jnp.dot(w3h_ref[...], h, preferred_element_type=jnp.float32)
         + jnp.dot(w3c_ref[...], c, preferred_element_type=jnp.float32)
         + b3_ref[...])
    h = jnp.maximum(h, 0.0).astype(jnp.bfloat16)

    # predictor (no ReLU); output tile (K, tp) is lane-dense and maps straight
    # back into the (N, K, P) logits tensor.
    out = (jnp.dot(wph_ref[...], h, preferred_element_type=jnp.float32)
           + jnp.dot(wpc_ref[...], c, preferred_element_type=jnp.float32)
           + bp_ref[...])
    out_ref[0] = out.astype(out_ref.dtype)


def _pick_point_tile(P, tp_req, n_batch):
    """Largest multiple-of-128 tile <= tp_req that divides the 128-padded P,
    shrunk if needed so the grid has >=2 steps (keeps both v7x TCs busy)."""
    tp_req = max(128, _round_up(tp_req, 128))
    p128 = _round_up(P, 128)
    cands = [t for t in range(128, tp_req + 1, 128) if p128 % t == 0]
    tp = cands[-1]
    if n_batch * (p128 // tp) < 2:
        for t in reversed(cands):
            if n_batch * (p128 // t) >= 2:
                tp = t
                break
    return tp, p128


def standard_point_head_forward(fine, coarse, packed_params, *,
                                tp=1024, out_dtype=jnp.float32):
    """fine: (N, C_fine, P) f32, coarse: (N, K, P) f32 -> logits (N, K, P)."""
    N, C_fg, P = fine.shape
    K = coarse.shape[1]
    (w1f, w1c, w2h, w2c, w3h, w3c, wph, wpc, b1, b2, b3, bp) = packed_params

    tp, p_pad = _pick_point_tile(P, tp, N)

    # Only layout op left in the wrapper: zero-pad P up to a multiple of 128
    # (no-op for the common case where P already is one).
    if p_pad != P:
        fine = jnp.pad(fine, ((0, 0), (0, 0), (0, p_pad - P)))
        coarse = jnp.pad(coarse, ((0, 0), (0, 0), (0, p_pad - P)))

    def wspec(shape):
        rank = len(shape)
        return pl.BlockSpec(shape, lambda n, p, _r=rank: (0,) * _r)

    grid = (N, p_pad // tp)
    out = pl.pallas_call(
        _point_head_kernel,
        out_shape=jax.ShapeDtypeStruct((N, K, p_pad), out_dtype),
        grid_spec=pltpu.PrefetchScalarGridSpec(
            num_scalar_prefetch=0,
            grid=grid,
            in_specs=[
                pl.BlockSpec((1, C_fg, tp), lambda n, p: (n, 0, p)),   # fine
                pl.BlockSpec((1, K, tp), lambda n, p: (n, 0, p)),      # coarse
                wspec(w1f.shape), wspec(w1c.shape),
                wspec(w2h.shape), wspec(w2c.shape),
                wspec(w3h.shape), wspec(w3c.shape),
                wspec(wph.shape), wspec(wpc.shape),
                wspec(b1.shape), wspec(b2.shape), wspec(b3.shape), wspec(bp.shape),
            ],
            out_specs=pl.BlockSpec((1, K, tp), lambda n, p: (n, 0, p)),
        ),
        compiler_params=pltpu.CompilerParams(
            dimension_semantics=("parallel", "parallel"),
            vmem_limit_bytes=32 * 1024 * 1024),
    )(fine, coarse, w1f, w1c, w2h, w2c, w3h, w3c, wph, wpc, b1, b2, b3, bp)

    if p_pad != P:
        out = out[:, :, :P]
    return out


def init_point_head_params(key, input_channels, num_classes, fc_dim):
    """Synthetic init matching the module: c2_msra_fill for fc1..3, N(0,0.001)
    for the predictor, zero biases.  Weights kept in Conv1d (C_out, C_in) layout."""
    K = num_classes
    keys = jax.random.split(key, 4)

    def msra(k, c_out, c_in):
        std = (2.0 / c_out) ** 0.5   # kaiming normal, fan_out, 1x1 conv
        return jax.random.normal(k, (c_out, c_in), jnp.float32) * std

    w1 = msra(keys[0], fc_dim, input_channels + K)
    w2 = msra(keys[1], fc_dim, fc_dim + K)
    w3 = msra(keys[2], fc_dim, fc_dim + K)
    wp = jax.random.normal(keys[3], (K, fc_dim + K), jnp.float32) * 0.001
    b1 = jnp.zeros((fc_dim,), jnp.float32)
    b2 = jnp.zeros((fc_dim,), jnp.float32)
    b3 = jnp.zeros((fc_dim,), jnp.float32)
    bp = jnp.zeros((K,), jnp.float32)
    return (w1, b1, w2, b2, w3, b3, wp, bp)


def pack_point_head_params(raw, input_channels, num_classes, fc_dim):
    """Split each layer's weight into its hidden/fine part and coarse part,
    cast matmul operands to bf16 once; biases stay f32 as (C, 1) columns."""
    (w1, b1, w2, b2, w3, b3, wp, bp) = raw
    to_bf16 = lambda a: a.astype(jnp.bfloat16)

    w1f, w1c = to_bf16(w1[:, :input_channels]), to_bf16(w1[:, input_channels:])
    w2h, w2c = to_bf16(w2[:, :fc_dim]), to_bf16(w2[:, fc_dim:])
    w3h, w3c = to_bf16(w3[:, :fc_dim]), to_bf16(w3[:, fc_dim:])
    wph, wpc = to_bf16(wp[:, :fc_dim]), to_bf16(wp[:, fc_dim:])

    b1c = b1.reshape(fc_dim, 1)
    b2c = b2.reshape(fc_dim, 1)
    b3c = b3.reshape(fc_dim, 1)
    bpc = bp.reshape(num_classes, 1)
    return (w1f, w1c, w2h, w2c, w3h, w3c, wph, wpc, b1c, b2c, b3c, bpc)


def _reference_forward(fine, coarse, raw):
    """Pure-JAX f32 reference replicating the PyTorch forward (NCP layout)."""
    (w1, b1, w2, b2, w3, b3, wp, bp) = raw

    def conv1x1(x, w, b):
        return jnp.einsum('oc,ncp->nop', w, x) + b[None, :, None]

    x = jnp.concatenate([fine, coarse], axis=1)
    h = jax.nn.relu(conv1x1(x, w1, b1))
    h = jax.nn.relu(conv1x1(jnp.concatenate([h, coarse], axis=1), w2, b2))
    h = jax.nn.relu(conv1x1(jnp.concatenate([h, coarse], axis=1), w3, b3))
    return conv1x1(jnp.concatenate([h, coarse], axis=1), wp, bp)


if __name__ == "__main__":
    # Small, module-consistent shapes: 2 ROIs x 256 sampled points.
    N, P = 2, 256
    input_channels = 8
    num_classes = 16
    fc_dim = 32

    key = jax.random.PRNGKey(0)
    k_fine, k_coarse, k_params = jax.random.split(key, 3)

    fine_grained_features = jax.random.normal(
        k_fine, (N, input_channels, P), jnp.float32)
    coarse_features = jax.random.normal(
        k_coarse, (N, num_classes, P), jnp.float32)

    raw_params = init_point_head_params(k_params, input_channels, num_classes, fc_dim)
    packed_params = pack_point_head_params(raw_params, input_channels, num_classes, fc_dim)

    out = standard_point_head_forward(fine_grained_features, coarse_features, packed_params)
    out = jax.block_until_ready(out)

    ref = _reference_forward(fine_grained_features, coarse_features, raw_params)
    assert out.shape == (N, num_classes, P)
    # bf16 matmul operands with f32 accumulation -> loosened tolerance vs f32 ref.
    assert jnp.allclose(out, ref, atol=1e-2, rtol=1e-2), (
        float(jnp.max(jnp.abs(out - ref))))

    # TODO(synk): roi_mask_point_loss (grid_sample-based GT point sampling + BCE)
    # is training-only host-side glue with data-dependent control flow; not ported.
    print("KERNEL_OK")
</pallas_src>

<mosaic_0001>
module attributes {stable_mosaic.version = 11 : i64} {
  func.func @_point_head_kernel(%arg0: i32, %arg1: i32, %arg2: memref<1x8x256xf32, #tpu.memory_space<vmem>>, %arg3: memref<1x16x256xf32, #tpu.memory_space<vmem>>, %arg4: memref<32x8xbf16, #tpu.memory_space<vmem>>, %arg5: memref<32x16xbf16, #tpu.memory_space<vmem>>, %arg6: memref<32x32xbf16, #tpu.memory_space<vmem>>, %arg7: memref<32x16xbf16, #tpu.memory_space<vmem>>, %arg8: memref<32x32xbf16, #tpu.memory_space<vmem>>, %arg9: memref<32x16xbf16, #tpu.memory_space<vmem>>, %arg10: memref<16x32xbf16, #tpu.memory_space<vmem>>, %arg11: memref<16x16xbf16, #tpu.memory_space<vmem>>, %arg12: memref<32x1xf32, #tpu.memory_space<vmem>>, %arg13: memref<32x1xf32, #tpu.memory_space<vmem>>, %arg14: memref<32x1xf32, #tpu.memory_space<vmem>>, %arg15: memref<16x1xf32, #tpu.memory_space<vmem>>, %arg16: memref<1x16x256xf32, #tpu.memory_space<vmem>>) attributes {dimension_semantics = [#tpu.dimension_semantics<parallel>, #tpu.dimension_semantics<parallel>], iteration_bounds = array<i64: 2, 1>, scalar_prefetch = 0 : i64, scratch_operands = 0 : i64, tpu.core_type = #tpu.core_type<tc>, window_params = [{transform_indices = @transform_0, window_bounds = array<i64: 1, 8, 256>}, {transform_indices = @transform_1, window_bounds = array<i64: 1, 16, 256>}, {pipeline_mode = #tpu.pipeline_mode<synchronous>, transform_indices = @transform_2, window_bounds = array<i64: 32, 8>}, {pipeline_mode = #tpu.pipeline_mode<synchronous>, transform_indices = @transform_3, window_bounds = array<i64: 32, 16>}, {pipeline_mode = #tpu.pipeline_mode<synchronous>, transform_indices = @transform_4, window_bounds = array<i64: 32, 32>}, {pipeline_mode = #tpu.pipeline_mode<synchronous>, transform_indices = @transform_5, window_bounds = array<i64: 32, 16>}, {pipeline_mode = #tpu.pipeline_mode<synchronous>, transform_indices = @transform_6, window_bounds = array<i64: 32, 32>}, {pipeline_mode = #tpu.pipeline_mode<synchronous>, transform_indices = @transform_7, window_bounds = array<i64: 32, 16>}, {pipeline_mode = #tpu.pipeline_mode<synchronous>, transform_indices = @transform_8, window_bounds = array<i64: 16, 32>}, {pipeline_mode = #tpu.pipeline_mode<synchronous>, transform_indices = @transform_9, window_bounds = array<i64: 16, 16>}, {pipeline_mode = #tpu.pipeline_mode<synchronous>, transform_indices = @transform_10, window_bounds = array<i64: 32, 1>}, {pipeline_mode = #tpu.pipeline_mode<synchronous>, transform_indices = @transform_11, window_bounds = array<i64: 32, 1>}, {pipeline_mode = #tpu.pipeline_mode<synchronous>, transform_indices = @transform_12, window_bounds = array<i64: 32, 1>}, {pipeline_mode = #tpu.pipeline_mode<synchronous>, transform_indices = @transform_13, window_bounds = array<i64: 16, 1>}, {transform_indices = @transform_14, window_bounds = array<i64: 1, 16, 256>}]} {
    %c0 = arith.constant 0 : index
    %c0_0 = arith.constant 0 : index
    %c0_1 = arith.constant 0 : index
    %0 = vector.load %arg2[%c0, %c0_0, %c0_1] : memref<1x8x256xf32, #tpu.memory_space<vmem>>, vector<1x8x256xf32>
    %1 = vector.shape_cast %0 : vector<1x8x256xf32> to vector<8x256xf32>
    %2 = arith.truncf %1 : vector<8x256xf32> to vector<8x256xbf16>
    %c0_2 = arith.constant 0 : index
    %c0_3 = arith.constant 0 : index
    %c0_4 = arith.constant 0 : index
    %3 = vector.load %arg3[%c0_2, %c0_3, %c0_4] : memref<1x16x256xf32, #tpu.memory_space<vmem>>, vector<1x16x256xf32>
    %4 = vector.shape_cast %3 : vector<1x16x256xf32> to vector<16x256xf32>
    %5 = arith.truncf %4 : vector<16x256xf32> to vector<16x256xbf16>
    %c0_5 = arith.constant 0 : index
    %c0_6 = arith.constant 0 : index
    %6 = vector.load %arg4[%c0_5, %c0_6] : memref<32x8xbf16, #tpu.memory_space<vmem>>, vector<32x8xbf16>
    %cst = arith.constant dense<0.000000e+00> : vector<32x256xf32>
    %7 = tpu.matmul %6, %2, %cst {dimension_numbers = #tpu.dot_dimension_numbers<[1], [0], [0], [1], [0, 0, 1, 1], [], []>} : vector<32x8xbf16>, vector<8x256xbf16>, vector<32x256xf32> -> vector<32x256xf32>
    %c0_7 = arith.constant 0 : index
    %c0_8 = arith.constant 0 : index
    %8 = vector.load %arg5[%c0_7, %c0_8] : memref<32x16xbf16, #tpu.memory_space<vmem>>, vector<32x16xbf16>
    %cst_9 = arith.constant dense<0.000000e+00> : vector<32x256xf32>
    %9 = tpu.matmul %8, %5, %cst_9 {dimension_numbers = #tpu.dot_dimension_numbers<[1], [0], [0], [1], [0, 0, 1, 1], [], []>} : vector<32x16xbf16>, vector<16x256xbf16>, vector<32x256xf32> -> vector<32x256xf32>
    %10 = arith.addf %7, %9 : vector<32x256xf32>
    %c0_10 = arith.constant 0 : index
    %c0_11 = arith.constant 0 : index
    %11 = vector.load %arg12[%c0_10, %c0_11] : memref<32x1xf32, #tpu.memory_space<vmem>>, vector<32x1xf32>
    %12 = vector.broadcast %11 : vector<32x1xf32> to vector<32x256xf32>
    %13 = arith.addf %10, %12 : vector<32x256xf32>
    %cst_12 = arith.constant 0.000000e+00 : f32
    %14 = vector.broadcast %cst_12 : f32 to vector<32x256xf32>
    %15 = arith.maximumf %13, %14 : vector<32x256xf32>
    %16 = arith.truncf %15 : vector<32x256xf32> to vector<32x256xbf16>
    %c0_13 = arith.constant 0 : index
    %c0_14 = arith.constant 0 : index
    %17 = vector.load %arg6[%c0_13, %c0_14] : memref<32x32xbf16, #tpu.memory_space<vmem>>, vector<32x32xbf16>
    %cst_15 = arith.constant dense<0.000000e+00> : vector<32x256xf32>
    %18 = tpu.matmul %17, %16, %cst_15 {dimension_numbers = #tpu.dot_dimension_numbers<[1], [0], [0], [1], [0, 0, 1, 1], [], []>} : vector<32x32xbf16>, vector<32x256xbf16>, vector<32x256xf32> -> vector<32x256xf32>
    %c0_16 = arith.constant 0 : index
    %c0_17 = arith.constant 0 : index
    %19 = vector.load %arg7[%c0_16, %c0_17] : memref<32x16xbf16, #tpu.memory_space<vmem>>, vector<32x16xbf16>
    %cst_18 = arith.constant dense<0.000000e+00> : vector<32x256xf32>
    %20 = tpu.matmul %19, %5, %cst_18 {dimension_numbers = #tpu.dot_dimension_numbers<[1], [0], [0], [1], [0, 0, 1, 1], [], []>} : vector<32x16xbf16>, vector<16x256xbf16>, vector<32x256xf32> -> vector<32x256xf32>
    %21 = arith.addf %18, %20 : vector<32x256xf32>
    %c0_19 = arith.constant 0 : index
    %c0_20 = arith.constant 0 : index
    %22 = vector.load %arg13[%c0_19, %c0_20] : memref<32x1xf32, #tpu.memory_space<vmem>>, vector<32x1xf32>
    %23 = vector.broadcast %22 : vector<32x1xf32> to vector<32x256xf32>
    %24 = arith.addf %21, %23 : vector<32x256xf32>
    %cst_21 = arith.constant 0.000000e+00 : f32
    %25 = vector.broadcast %cst_21 : f32 to vector<32x256xf32>
    %26 = arith.maximumf %24, %25 : vector<32x256xf32>
    %27 = arith.truncf %26 : vector<32x256xf32> to vector<32x256xbf16>
    %c0_22 = arith.constant 0 : index
    %c0_23 = arith.constant 0 : index
    %28 = vector.load %arg8[%c0_22, %c0_23] : memref<32x32xbf16, #tpu.memory_space<vmem>>, vector<32x32xbf16>
    %cst_24 = arith.constant dense<0.000000e+00> : vector<32x256xf32>
    %29 = tpu.matmul %28, %27, %cst_24 {dimension_numbers = #tpu.dot_dimension_numbers<[1], [0], [0], [1], [0, 0, 1, 1], [], []>} : vector<32x32xbf16>, vector<32x256xbf16>, vector<32x256xf32> -> vector<32x256xf32>
    %c0_25 = arith.constant 0 : index
    %c0_26 = arith.constant 0 : index
    %30 = vector.load %arg9[%c0_25, %c0_26] : memref<32x16xbf16, #tpu.memory_space<vmem>>, vector<32x16xbf16>
    %cst_27 = arith.constant dense<0.000000e+00> : vector<32x256xf32>
    %31 = tpu.matmul %30, %5, %cst_27 {dimension_numbers = #tpu.dot_dimension_numbers<[1], [0], [0], [1], [0, 0, 1, 1], [], []>} : vector<32x16xbf16>, vector<16x256xbf16>, vector<32x256xf32> -> vector<32x256xf32>
    %32 = arith.addf %29, %31 : vector<32x256xf32>
    %c0_28 = arith.constant 0 : index
    %c0_29 = arith.constant 0 : index
    %33 = vector.load %arg14[%c0_28, %c0_29] : memref<32x1xf32, #tpu.memory_space<vmem>>, vector<32x1xf32>
    %34 = vector.broadcast %33 : vector<32x1xf32> to vector<32x256xf32>
    %35 = arith.addf %32, %34 : vector<32x256xf32>
    %cst_30 = arith.constant 0.000000e+00 : f32
    %36 = vector.broadcast %cst_30 : f32 to vector<32x256xf32>
    %37 = arith.maximumf %35, %36 : vector<32x256xf32>
    %38 = arith.truncf %37 : vector<32x256xf32> to vector<32x256xbf16>
    %c0_31 = arith.constant 0 : index
    %c0_32 = arith.constant 0 : index
    %39 = vector.load %arg10[%c0_31, %c0_32] : memref<16x32xbf16, #tpu.memory_space<vmem>>, vector<16x32xbf16>
    %cst_33 = arith.constant dense<0.000000e+00> : vector<16x256xf32>
    %40 = tpu.matmul %39, %38, %cst_33 {dimension_numbers = #tpu.dot_dimension_numbers<[1], [0], [0], [1], [0, 0, 1, 1], [], []>} : vector<16x32xbf16>, vector<32x256xbf16>, vector<16x256xf32> -> vector<16x256xf32>
    %c0_34 = arith.constant 0 : index
    %c0_35 = arith.constant 0 : index
    %41 = vector.load %arg11[%c0_34, %c0_35] : memref<16x16xbf16, #tpu.memory_space<vmem>>, vector<16x16xbf16>
    %cst_36 = arith.constant dense<0.000000e+00> : vector<16x256xf32>
    %42 = tpu.matmul %41, %5, %cst_36 {dimension_numbers = #tpu.dot_dimension_numbers<[1], [0], [0], [1], [0, 0, 1, 1], [], []>} : vector<16x16xbf16>, vector<16x256xbf16>, vector<16x256xf32> -> vector<16x256xf32>
    %43 = arith.addf %40, %42 : vector<16x256xf32>
    %c0_37 = arith.constant 0 : index
    %c0_38 = arith.constant 0 : index
    %44 = vector.load %arg15[%c0_37, %c0_38] : memref<16x1xf32, #tpu.memory_space<vmem>>, vector<16x1xf32>
    %45 = vector.broadcast %44 : vector<16x1xf32> to vector<16x256xf32>
    %46 = arith.addf %43, %45 : vector<16x256xf32>
    %c0_39 = arith.constant 0 : index
    %c0_40 = arith.constant 0 : index
    %c0_41 = arith.constant 0 : index
    %47 = vector.load %arg16[%c0_39, %c0_40, %c0_41] : memref<1x16x256xf32, #tpu.memory_space<vmem>>, vector<1x16x256xf32>
    %48 = vector.shape_cast %47 : vector<1x16x256xf32> to vector<16x256xf32>
    %49 = vector.shape_cast %46 : vector<16x256xf32> to vector<1x16x256xf32>
    tpu.vector_store %arg16[%c0_39, %c0_40, %c0_41], %49 {strides = array<i32>} : memref<1x16x256xf32, #tpu.memory_space<vmem>>, vector<1x16x256xf32>,
    return
  }
  func.func @transform_0(%arg0: i32, %arg1: i32) -> (i32, i32, i32) {
    %c0_i32 = arith.constant 0 : i32
    %c0_i32_0 = arith.constant 0 : i32
    return %arg0, %c0_i32, %arg1 : i32, i32, i32
  }
  func.func @transform_1(%arg0: i32, %arg1: i32) -> (i32, i32, i32) {
    %c0_i32 = arith.constant 0 : i32
    %c0_i32_0 = arith.constant 0 : i32
    return %arg0, %c0_i32, %arg1 : i32, i32, i32
  }
  func.func @transform_2(%arg0: i32, %arg1: i32) -> (i32, i32) {
    %c0_i32 = arith.constant 0 : i32
    %c0_i32_0 = arith.constant 0 : i32
    %c0_i32_1 = arith.constant 0 : i32
    return %c0_i32, %c0_i32_0 : i32, i32
  }
  func.func @transform_3(%arg0: i32, %arg1: i32) -> (i32, i32) {
    %c0_i32 = arith.constant 0 : i32
    %c0_i32_0 = arith.constant 0 : i32
    %c0_i32_1 = arith.constant 0 : i32
    return %c0_i32, %c0_i32_0 : i32, i32
  }
  func.func @transform_4(%arg0: i32, %arg1: i32) -> (i32, i32) {
    %c0_i32 = arith.constant 0 : i32
    %c0_i32_0 = arith.constant 0 : i32
    %c0_i32_1 = arith.constant 0 : i32
    return %c0_i32, %c0_i32_0 : i32, i32
  }
  func.func @transform_5(%arg0: i32, %arg1: i32) -> (i32, i32) {
    %c0_i32 = arith.constant 0 : i32
    %c0_i32_0 = arith.constant 0 : i32
    %c0_i32_1 = arith.constant 0 : i32
    return %c0_i32, %c0_i32_0 : i32, i32
  }
  func.func @transform_6(%arg0: i32, %arg1: i32) -> (i32, i32) {
    %c0_i32 = arith.constant 0 : i32
    %c0_i32_0 = arith.constant 0 : i32
    %c0_i32_1 = arith.constant 0 : i32
    return %c0_i32, %c0_i32_0 : i32, i32
  }
  func.func @transform_7(%arg0: i32, %arg1: i32) -> (i32, i32) {
    %c0_i32 = arith.constant 0 : i32
    %c0_i32_0 = arith.constant 0 : i32
    %c0_i32_1 = arith.constant 0 : i32
    return %c0_i32, %c0_i32_0 : i32, i32
  }
  func.func @transform_8(%arg0: i32, %arg1: i32) -> (i32, i32) {
    %c0_i32 = arith.constant 0 : i32
    %c0_i32_0 = arith.constant 0 : i32
    %c0_i32_1 = arith.constant 0 : i32
    return %c0_i32, %c0_i32_0 : i32, i32
  }
  func.func @transform_9(%arg0: i32, %arg1: i32) -> (i32, i32) {
    %c0_i32 = arith.constant 0 : i32
    %c0_i32_0 = arith.constant 0 : i32
    %c0_i32_1 = arith.constant 0 : i32
    return %c0_i32, %c0_i32_0 : i32, i32
  }
  func.func @transform_10(%arg0: i32, %arg1: i32) -> (i32, i32) {
    %c0_i32 = arith.constant 0 : i32
    %c0_i32_0 = arith.constant 0 : i32
    %c0_i32_1 = arith.constant 0 : i32
    return %c0_i32, %c0_i32_0 : i32, i32
  }
  func.func @transform_11(%arg0: i32, %arg1: i32) -> (i32, i32) {
    %c0_i32 = arith.constant 0 : i32
    %c0_i32_0 = arith.constant 0 : i32
    %c0_i32_1 = arith.constant 0 : i32
    return %c0_i32, %c0_i32_0 : i32, i32
  }
  func.func @transform_12(%arg0: i32, %arg1: i32) -> (i32, i32) {
    %c0_i32 = arith.constant 0 : i32
    %c0_i32_0 = arith.constant 0 : i32
    %c0_i32_1 = arith.constant 0 : i32
    return %c0_i32, %c0_i32_0 : i32, i32
  }
  func.func @transform_13(%arg0: i32, %arg1: i32) -> (i32, i32) {
    %c0_i32 = arith.constant 0 : i32
    %c0_i32_0 = arith.constant 0 : i32
    %c0_i32_1 = arith.constant 0 : i32
    return %c0_i32, %c0_i32_0 : i32, i32
  }
  func.func @transform_14(%arg0: i32, %arg1: i32) -> (i32, i32, i32) {
    %c0_i32 = arith.constant 0 : i32
    %c0_i32_0 = arith.constant 0 : i32
    return %arg0, %c0_i32, %arg1 : i32, i32, i32
  }
}

</mosaic_0001>

<llo_original>
// kernel: tpu_custom_call.1
$region0: #{tpu_custom_call.1}
  #allocation0 [shape = 'u32[]', space=smem, size = 0x4, offset = 0x4, fixed_abs, tag = 'smem constant byte address 0x4 - core index']
  #allocation1 [shape = 'u32[144,128]{1,0:T(1,128)}', space=vmem, size = 0x12000, scoped, tag = 'internal scratch']
  %s0 = inlined_call_operand.vmem [shape: f32[2,8,256], index: 0, kind: input, shape index: {}]
  %s1 = inlined_call_operand.vmem [shape: f32[2,16,256], index: 1, kind: input, shape index: {}]
  %s2 = inlined_call_operand.vmem [shape: bf16[32,8], index: 2, kind: input, shape index: {}]
  %s3 = inlined_call_operand.vmem [shape: bf16[32,16], index: 3, kind: input, shape index: {}]
  %s4 = inlined_call_operand.vmem [shape: bf16[32,32], index: 4, kind: input, shape index: {}]
  %s5 = inlined_call_operand.vmem [shape: bf16[32,16], index: 5, kind: input, shape index: {}]
  %s6 = inlined_call_operand.vmem [shape: bf16[32,32], index: 6, kind: input, shape index: {}]
  %s7 = inlined_call_operand.vmem [shape: bf16[32,16], index: 7, kind: input, shape index: {}]
  %s8 = inlined_call_operand.vmem [shape: bf16[16,32], index: 8, kind: input, shape index: {}]
  %s9 = inlined_call_operand.vmem [shape: bf16[16,16], index: 9, kind: input, shape index: {}]
  %s10 = inlined_call_operand.vmem [shape: f32[32,1], index: 10, kind: input, shape index: {}]
  %s11 = inlined_call_operand.vmem [shape: f32[32,1], index: 11, kind: input, shape index: {}]
  %s12 = inlined_call_operand.vmem [shape: f32[32,1], index: 12, kind: input, shape index: {}]
  %s13 = inlined_call_operand.vmem [shape: f32[16,1], index: 13, kind: input, shape index: {}]
  %s14 = inlined_call_operand.hbm [shape: f32[2,16,256], index: 14, kind: output, shape index: {}]
  %s15 = sld [smem:[#allocation0]]
  $region89: #{tpu_custom_call.1} parent=0
    _
  %s17 = ssub.s32 1, %s15
  %s18 = scalar_select 0, %s17, %s15
  $region1: #{tpu_custom_call.1} parent=0
    #allocation2 [shape = 'u8[32768]{0}', space=vmem, size = 0x8000, scoped, tag = 'output window, operand 0']
    #allocation3 [shape = 's32[2]{0}', space=sflag, size = 0x8, scoped, tag = 'scoped memory for tpu_custom_call.1']
    %19 = vsyncpa [#allocation3], 0
    %s20 = scalar_lea.sflag [#allocation3], 1
    %21 = vsyncpa %s20, 0
    loop: start=0, step=1, limit=4
    $region2: #{tpu_custom_call.1} parent=1 // loop_pre_header
      _
    $region3: #{tpu_custom_call.1} parent=1 // loop_header
      %s23 = sphi 0, %s27
      %p24 = scmp.ge.s32.totalorder %s23, 4
      %s30 = sphi 0, %s42
      %s31 = sphi 0, %s38
      %s32 = sphi 0, %s30
      %s33 = sphi 0, %s31
      %s34 = sphi 0, %s32
      %s35 = sphi 0, %s33
      %s47 = sphi 0, %s49
      %s50 = sphi 0, %s47
      %s51 = sphi 0, %s50
      %s67 = sphi 0, %s51
      %s75 = sphi 0, %s77
      %s78 = sphi 0, %s75
      %s79 = sphi 0, %s78
      %s95 = sphi 0, %s79
      %s99 = sphi 0, %s99
      %s101 = sphi 0, %s99
      %s102 = sphi 0, %s101
      %s116 = sphi 0, %s102
      %s120 = sphi 0, %s120
      %s122 = sphi 0, %s120
      %s123 = sphi 0, %s122
      %s137 = sphi 0, %s123
      %s141 = sphi 0, %s141
      %s143 = sphi 0, %s141
      %s144 = sphi 0, %s143
      %s158 = sphi 0, %s144
      %s162 = sphi 0, %s162
      %s164 = sphi 0, %s162
      %s165 = sphi 0, %s164
      %s179 = sphi 0, %s165
      %s183 = sphi 0, %s183
      %s185 = sphi 0, %s183
      %s186 = sphi 0, %s185
      %s200 = sphi 0, %s186
      %s204 = sphi 0, %s204
      %s206 = sphi 0, %s204
      %s207 = sphi 0, %s206
      %s221 = sphi 0, %s207
      %s225 = sphi 0, %s225
      %s227 = sphi 0, %s225
      %s228 = sphi 0, %s227
      %s242 = sphi 0, %s228
      %s246 = sphi 0, %s246
      %s248 = sphi 0, %s246
      %s249 = sphi 0, %s248
      %s263 = sphi 0, %s249
      %s267 = sphi 0, %s267
      %s269 = sphi 0, %s267
      %s270 = sphi 0, %s269
      %s284 = sphi 0, %s270
      %s288 = sphi 0, %s288
      %s290 = sphi 0, %s288
      %s291 = sphi 0, %s290
      %s305 = sphi 0, %s291
      %s309 = sphi 0, %s309
      %s311 = sphi 0, %s309
      %s312 = sphi 0, %s311
      %s326 = sphi 0, %s312
      %s330 = sphi 0, %s330
      %s332 = sphi 0, %s330
      %s333 = sphi 0, %s332
      %s347 = sphi 0, %s333
      %s355 = sphi 0, %s357
      %s358 = sphi 0, %s355
      %s359 = sphi 0, %s358
      %s375 = sphi 0, %s359
    $region4: #{tpu_custom_call.1} parent=1 // loop_header_branch
      %26 = sbr.rel (%p24) target = $region8
    $region5: #{tpu_custom_call.1} parent=1 // loop_body
      %s28 = ssub.s32 %s23, 1
      %s29 = ssub.s32 %s23, 2
      %s36 = sadd.s32 1, %s31
      %p37 = scmp.ge.s32.totalorder %s36, 1
      %s38 = scalar_select %p37, 0, %s36
      %s39 = sadd.s32 1, %s30
      %s40 = scalar_select %p37, %s39, %s30
      %p41 = scmp.ge.s32.totalorder %s40, 2
      %s42 = scalar_select %p41, 0, %s40
      %s43 = ssub.s32 %s30, %s42
      %s44 = ssub.s32 %s31, %s38
      %s45 = sor.u32 %s43, %s44
      %p46 = scmp.eq.s32.totalorder %s45, 0
      %s48 = sadd.s32 %s47, 1
      %s49 = scalar_select %p46, %s47, %s48
      %p52 = pneg %p46
      %p53 = scmp.eq.s32.totalorder %s23, 1
      %p54 = por %p52, %p53
      %p55 = scmp.ne.s32.totalorder %s47, %s50
      %p56 = scmp.eq.s32.totalorder %s23, 0
      %p57 = por %p55, %p56
      %p58 = scmp.ne.s32.totalorder %s47, %s50
      %p59 = scmp.eq.s32.totalorder %s28, 1
      %p60 = por %p58, %p59
      %p61 = scmp.ne.s32.totalorder %s50, %s51
      %p62 = scmp.eq.s32.totalorder %s28, 0
      %p63 = por %p61, %p62
      %p64 = scmp.ne.s32.totalorder %s50, %s51
      %p65 = scmp.eq.s32.totalorder %s29, 1
      %p66 = por %p64, %p65
      %p68 = scmp.ne.s32.totalorder %s51, %s67
      %p69 = scmp.eq.s32.totalorder %s29, 0
      %p70 = por %p68, %p69
      %s71 = ssub.s32 %s30, %s42
      %s72 = ssub.s32 %s31, %s38
      %s73 = sor.u32 %s71, %s72
      %p74 = scmp.eq.s32.totalorder %s73, 0
      %s76 = sadd.s32 %s75, 1
      %s77 = scalar_select %p74, %s75, %s76
      %p80 = pneg %p74
      %p81 = scmp.eq.s32.totalorder %s23, 1
      %p82 = por %p80, %p81
      %p83 = scmp.ne.s32.totalorder %s75, %s78
      %p84 = scmp.eq.s32.totalorder %s23, 0
      %p85 = por %p83, %p84
      %p86 = scmp.ne.s32.totalorder %s75, %s78
      %p87 = scmp.eq.s32.totalorder %s28, 1
      %p88 = por %p86, %p87
      %p89 = scmp.ne.s32.totalorder %s78, %s79
      %p90 = scmp.eq.s32.totalorder %s28, 0
      %p91 = por %p89, %p90
      %p92 = scmp.ne.s32.totalorder %s78, %s79
      %p93 = scmp.eq.s32.totalorder %s29, 1
      %p94 = por %p92, %p93
      %p96 = scmp.ne.s32.totalorder %s79, %s95
      %p97 = scmp.eq.s32.totalorder %s29, 0
      %p98 = por %p96, %p97
      %s100 = sadd.s32 %s99, 1
      %p103 = scmp.eq.s32.totalorder %s23, 1
      %p104 = scmp.ne.s32.totalorder %s99, %s101
      %p105 = scmp.eq.s32.totalorder %s23, 0
      %p106 = por %p104, %p105
      %p107 = scmp.ne.s32.totalorder %s99, %s101
      %p108 = scmp.eq.s32.totalorder %s28, 1
      %p109 = por %p107, %p108
      %p110 = scmp.ne.s32.totalorder %s101, %s102
      %p111 = scmp.eq.s32.totalorder %s28, 0
      %p112 = por %p110, %p111
      %p113 = scmp.ne.s32.totalorder %s101, %s102
      %p114 = scmp.eq.s32.totalorder %s29, 1
      %p115 = por %p113, %p114
      %p117 = scmp.ne.s32.totalorder %s102, %s116
      %p118 = scmp.eq.s32.totalorder %s29, 0
      %p119 = por %p117, %p118
      %s121 = sadd.s32 %s120, 1
      %p124 = scmp.eq.s32.totalorder %s23, 1
      %p125 = scmp.ne.s32.totalorder %s120, %s122
      %p126 = scmp.eq.s32.totalorder %s23, 0
      %p127 = por %p125, %p126
      %p128 = scmp.ne.s32.totalorder %s120, %s122
      %p129 = scmp.eq.s32.totalorder %s28, 1
      %p130 = por %p128, %p129
      %p131 = scmp.ne.s32.totalorder %s122, %s123
      %p132 = scmp.eq.s32.totalorder %s28, 0
      %p133 = por %p131, %p132
      %p134 = scmp.ne.s32.totalorder %s122, %s123
      %p135 = scmp.eq.s32.totalorder %s29, 1
      %p136 = por %p134, %p135
      %p138 = scmp.ne.s32.totalorder %s123, %s137
      %p139 = scmp.eq.s32.totalorder %s29, 0
      %p140 = por %p138, %p139
      %s142 = sadd.s32 %s141, 1
      %p145 = scmp.eq.s32.totalorder %s23, 1
      %p146 = scmp.ne.s32.totalorder %s141, %s143
      %p147 = scmp.eq.s32.totalorder %s23, 0
      %p148 = por %p146, %p147
      %p149 = scmp.ne.s32.totalorder %s141, %s143
      %p150 = scmp.eq.s32.totalorder %s28, 1
      %p151 = por %p149, %p150
      %p152 = scmp.ne.s32.totalorder %s143, %s144
      %p153 = scmp.eq.s32.totalorder %s28, 0
      %p154 = por %p152, %p153
      %p155 = scmp.ne.s32.totalorder %s143, %s144
      %p156 = scmp.eq.s32.totalorder %s29, 1
      %p157 = por %p155, %p156
      %p159 = scmp.ne.s32.totalorder %s144, %s158
      %p160 = scmp.eq.s32.totalorder %s29, 0
      %p161 = por %p159, %p160
      %s163 = sadd.s32 %s162, 1
      %p166 = scmp.eq.s32.totalorder %s23, 1
      %p167 = scmp.ne.s32.totalorder %s162, %s164
      %p168 = scmp.eq.s32.totalorder %s23, 0
      %p169 = por %p167, %p168
      %p170 = scmp.ne.s32.totalorder %s162, %s164
      %p171 = scmp.eq.s32.totalorder %s28, 1
      %p172 = por %p170, %p171
      %p173 = scmp.ne.s32.totalorder %s164, %s165
      %p174 = scmp.eq.s32.totalorder %s28, 0
      %p175 = por %p173, %p174
      %p176 = scmp.ne.s32.totalorder %s164, %s165
      %p177 = scmp.eq.s32.totalorder %s29, 1
      %p178 = por %p176, %p177
      %p180 = scmp.ne.s32.totalorder %s165, %s179
      %p181 = scmp.eq.s32.totalorder %s29, 0
      %p182 = por %p180, %p181
      %s184 = sadd.s32 %s183, 1
      %p187 = scmp.eq.s32.totalorder %s23, 1
      %p188 = scmp.ne.s32.totalorder %s183, %s185
      %p189 = scmp.eq.s32.totalorder %s23, 0
      %p190 = por %p188, %p189
      %p191 = scmp.ne.s32.totalorder %s183, %s185
      %p192 = scmp.eq.s32.totalorder %s28, 1
      %p193 = por %p191, %p192
      %p194 = scmp.ne.s32.totalorder %s185, %s186
      %p195 = scmp.eq.s32.totalorder %s28, 0
      %p196 = por %p194, %p195
      %p197 = scmp.ne.s32.totalorder %s185, %s186
      %p198 = scmp.eq.s32.totalorder %s29, 1
      %p199 = por %p197, %p198
      %p201 = scmp.ne.s32.totalorder %s186, %s200
      %p202 = scmp.eq.s32.totalorder %s29, 0
      %p203 = por %p201, %p202
      %s205 = sadd.s32 %s204, 1
      %p208 = scmp.eq.s32.totalorder %s23, 1
      %p209 = scmp.ne.s32.totalorder %s204, %s206
      %p210 = scmp.eq.s32.totalorder %s23, 0
      %p211 = por %p209, %p210
      %p212 = scmp.ne.s32.totalorder %s204, %s206
      %p213 = scmp.eq.s32.totalorder %s28, 1
      %p214 = por %p212, %p213
      %p215 = scmp.ne.s32.totalorder %s206, %s207
      %p216 = scmp.eq.s32.totalorder %s28, 0
      %p217 = por %p215, %p216
      %p218 = scmp.ne.s32.totalorder %s206, %s207
      %p219 = scmp.eq.s32.totalorder %s29, 1
      %p220 = por %p218, %p219
      %p222 = scmp.ne.s32.totalorder %s207, %s221
      %p223 = scmp.eq.s32.totalorder %s29, 0
      %p224 = por %p222, %p223
      %s226 = sadd.s32 %s225, 1
      %p229 = scmp.eq.s32.totalorder %s23, 1
      %p230 = scmp.ne.s32.totalorder %s225, %s227
      %p231 = scmp.eq.s32.totalorder %s23, 0
      %p232 = por %p230, %p231
      %p233 = scmp.ne.s32.totalorder %s225, %s227
      %p234 = scmp.eq.s32.totalorder %s28, 1
      %p235 = por %p233, %p234
      %p236 = scmp.ne.s32.totalorder %s227, %s228
      %p237 = scmp.eq.s32.totalorder %s28, 0
      %p238 = por %p236, %p237
      %p239 = scmp.ne.s32.totalorder %s227, %s228
      %p240 = scmp.eq.s32.totalorder %s29, 1
      %p241 = por %p239, %p240
      %p243 = scmp.ne.s32.totalorder %s228, %s242
      %p244 = scmp.eq.s32.totalorder %s29, 0
      %p245 = por %p243, %p244
      %s247 = sadd.s32 %s246, 1
      %p250 = scmp.eq.s32.totalorder %s23, 1
      %p251 = scmp.ne.s32.totalorder %s246, %s248
      %p252 = scmp.eq.s32.totalorder %s23, 0
      %p253 = por %p251, %p252
      %p254 = scmp.ne.s32.totalorder %s246, %s248
      %p255 = scmp.eq.s32.totalorder %s28, 1
      %p256 = por %p254, %p255
      %p257 = scmp.ne.s32.totalorder %s248, %s249
      %p258 = scmp.eq.s32.totalorder %s28, 0
      %p259 = por %p257, %p258
      %p260 = scmp.ne.s32.totalorder %s248, %s249
      %p261 = scmp.eq.s32.totalorder %s29, 1
      %p262 = por %p260, %p261
      %p264 = scmp.ne.s32.totalorder %s249, %s263
      %p265 = scmp.eq.s32.totalorder %s29, 0
      %p266 = por %p264, %p265
      %s268 = sadd.s32 %s267, 1
      %p271 = scmp.eq.s32.totalorder %s23, 1
      %p272 = scmp.ne.s32.totalorder %s267, %s269
      %p273 = scmp.eq.s32.totalorder %s23, 0
      %p274 = por %p272, %p273
      %p275 = scmp.ne.s32.totalorder %s267, %s269
      %p276 = scmp.eq.s32.totalorder %s28, 1
      %p277 = por %p275, %p276
      %p278 = scmp.ne.s32.totalorder %s269, %s270
      %p279 = scmp.eq.s32.totalorder %s28, 0
      %p280 = por %p278, %p279
      %p281 = scmp.ne.s32.totalorder %s269, %s270
      %p282 = scmp.eq.s32.totalorder %s29, 1
      %p283 = por %p281, %p282
      %p285 = scmp.ne.s32.totalorder %s270, %s284
      %p286 = scmp.eq.s32.totalorder %s29, 0
      %p287 = por %p285, %p286
      %s289 = sadd.s32 %s288, 1
      %p292 = scmp.eq.s32.totalorder %s23, 1
      %p293 = scmp.ne.s32.totalorder %s288, %s290
      %p294 = scmp.eq.s32.totalorder %s23, 0
      %p295 = por %p293, %p294
      %p296 = scmp.ne.s32.totalorder %s288, %s290
      %p297 = scmp.eq.s32.totalorder %s28, 1
      %p298 = por %p296, %p297
      %p299 = scmp.ne.s32.totalorder %s290, %s291
      %p300 = scmp.eq.s32.totalorder %s28, 0
      %p301 = por %p299, %p300
      %p302 = scmp.ne.s32.totalorder %s290, %s291
      %p303 = scmp.eq.s32.totalorder %s29, 1
      %p304 = por %p302, %p303
      %p306 = scmp.ne.s32.totalorder %s291, %s305
      %p307 = scmp.eq.s32.totalorder %s29, 0
      %p308 = por %p306, %p307
      %s310 = sadd.s32 %s309, 1
      %p313 = scmp.eq.s32.totalorder %s23, 1
      %p314 = scmp.ne.s32.totalorder %s309, %s311
      %p315 = scmp.eq.s32.totalorder %s23, 0
      %p316 = por %p314, %p315
      %p317 = scmp.ne.s32.totalorder %s309, %s311
      %p318 = scmp.eq.s32.totalorder %s28, 1
      %p319 = por %p317, %p318
      %p320 = scmp.ne.s32.totalorder %s311, %s312
      %p321 = scmp.eq.s32.totalorder %s28, 0
      %p322 = por %p320, %p321
      %p323 = scmp.ne.s32.totalorder %s311, %s312
      %p324 = scmp.eq.s32.totalorder %s29, 1
      %p325 = por %p323, %p324
      %p327 = scmp.ne.s32.totalorder %s312, %s326
      %p328 = scmp.eq.s32.totalorder %s29, 0
      %p329 = por %p327, %p328
      %s331 = sadd.s32 %s330, 1
      %p334 = scmp.eq.s32.totalorder %s23, 1
      %p335 = scmp.ne.s32.totalorder %s330, %s332
      %p336 = scmp.eq.s32.totalorder %s23, 0
      %p337 = por %p335, %p336
      %p338 = scmp.ne.s32.totalorder %s330, %s332
      %p339 = scmp.eq.s32.totalorder %s28, 1
      %p340 = por %p338, %p339
      %p341 = scmp.ne.s32.totalorder %s332, %s333
      %p342 = scmp.eq.s32.totalorder %s28, 0
      %p343 = por %p341, %p342
      %p344 = scmp.ne.s32.totalorder %s332, %s333
      %p345 = scmp.eq.s32.totalorder %s29, 1
      %p346 = por %p344, %p345
      %p348 = scmp.ne.s32.totalorder %s333, %s347
      %p349 = scmp.eq.s32.totalorder %s29, 0
      %p350 = por %p348, %p349
      %s351 = ssub.s32 %s30, %s42
      %s352 = ssub.s32 %s31, %s38
      %s353 = sor.u32 %s351, %s352
      %p354 = scmp.eq.s32.totalorder %s353, 0
      %s356 = sadd.s32 %s355, 1
      %s357 = scalar_select %p354, %s355, %s356
      %p360 = pneg %p354
      %p361 = scmp.eq.s32.totalorder %s23, 1
      %p362 = por %p360, %p361
      %p363 = scmp.ne.s32.totalorder %s355, %s358
      %p364 = scmp.eq.s32.totalorder %s23, 0
      %p365 = por %p363, %p364
      %p366 = scmp.ne.s32.totalorder %s355, %s358
      %p367 = scmp.eq.s32.totalorder %s28, 1
      %p368 = por %p366, %p367
      %p369 = scmp.ne.s32.totalorder %s358, %s359
      %p370 = scmp.eq.s32.totalorder %s28, 0
      %p371 = por %p369, %p370
      %p372 = scmp.ne.s32.totalorder %s358, %s359
      %p373 = scmp.eq.s32.totalorder %s29, 1
      %p374 = por %p372, %p373
      %p376 = scmp.ne.s32.totalorder %s359, %s375
      %p377 = scmp.eq.s32.totalorder %s29, 0
      %p378 = por %p376, %p377
      %p379 = scmp.le.s32.totalorder 1, %s23
      %p380 = scmp.lt.s32.totalorder %s23, 3
      %p381 = pnand %p379, %p380
      %p382 = pneg %p381
      // Predicated region
      $region9: #{tpu_custom_call.1} parent=5 // pred_check
        _
      $region10: #{tpu_custom_call.1} parent=5 // pred_check_branch
        %384 = sbr.rel (%p381) target = $region12
      $region11: #{tpu_custom_call.1} parent=5 // pred_region
        %s385 = ssub.s32 %s23, 1
        // Predicated region
        $region13: #{tpu_custom_call.1} parent=11 // pred_check
          %p386 = pneg %p112
        $region14: #{tpu_custom_call.1} parent=11 // pred_check_branch
          %388 = sbr.rel (%p386) target = $region16
        $region15: #{tpu_custom_call.1} parent=11 // pred_region
          _
        $region16: #{tpu_custom_call.1} parent=11 // pred_fallthru
          _
        // Predicated region
        $region17: #{tpu_custom_call.1} parent=11 // pred_check
          %p389 = pneg %p133
        $region18: #{tpu_custom_call.1} parent=11 // pred_check_branch
          %391 = sbr.rel (%p389) target = $region20
        $region19: #{tpu_custom_call.1} parent=11 // pred_region
          _
        $region20: #{tpu_custom_call.1} parent=11 // pred_fallthru
          _
        // Predicated region
        $region21: #{tpu_custom_call.1} parent=11 // pred_check
          %p392 = pneg %p154
        $region22: #{tpu_custom_call.1} parent=11 // pred_check_branch
          %394 = sbr.rel (%p392) target = $region24
        $region23: #{tpu_custom_call.1} parent=11 // pred_region
          _
        $region24: #{tpu_custom_call.1} parent=11 // pred_fallthru
          _
        // Predicated region
        $region25: #{tpu_custom_call.1} parent=11 // pred_check
          %p395 = pneg %p175
        $region26: #{tpu_custom_call.1} parent=11 // pred_check_branch
          %397 = sbr.rel (%p395) target = $region28
        $region27: #{tpu_custom_call.1} parent=11 // pred_region
          _
        $region28: #{tpu_custom_call.1} parent=11 // pred_fallthru
          _
        // Predicated region
        $region29: #{tpu_custom_call.1} parent=11 // pred_check
          %p398 = pneg %p196
        $region30: #{tpu_custom_call.1} parent=11 // pred_check_branch
          %400 = sbr.rel (%p398) target = $region32
        $region31: #{tpu_custom_call.1} parent=11 // pred_region
          _
        $region32: #{tpu_custom_call.1} parent=11 // pred_fallthru
          _
        // Predicated region
        $region33: #{tpu_custom_call.1} parent=11 // pred_check
          %p401 = pneg %p217
        $region34: #{tpu_custom_call.1} parent=11 // pred_check_branch
          %403 = sbr.rel (%p401) target = $region36
        $region35: #{tpu_custom_call.1} parent=11 // pred_region
          _
        $region36: #{tpu_custom_call.1} parent=11 // pred_fallthru
          _
        // Predicated region
        $region37: #{tpu_custom_call.1} parent=11 // pred_check
          %p404 = pneg %p238
        $region38: #{tpu_custom_call.1} parent=11 // pred_check_branch
          %406 = sbr.rel (%p404) target = $region40
        $region39: #{tpu_custom_call.1} parent=11 // pred_region
          _
        $region40: #{tpu_custom_call.1} parent=11 // pred_fallthru
          _
        // Predicated region
        $region41: #{tpu_custom_call.1} parent=11 // pred_check
          %p407 = pneg %p259
        $region42: #{tpu_custom_call.1} parent=11 // pred_check_branch
          %409 = sbr.rel (%p407) target = $region44
        $region43: #{tpu_custom_call.1} parent=11 // pred_region
          _
        $region44: #{tpu_custom_call.1} parent=11 // pred_fallthru
          _
        // Predicated region
        $region45: #{tpu_custom_call.1} parent=11 // pred_check
          %p410 = pneg %p280
        $region46: #{tpu_custom_call.1} parent=11 // pred_check_branch
          %412 = sbr.rel (%p410) target = $region48
        $region47: #{tpu_custom_call.1} parent=11 // pred_region
          _
        $region48: #{tpu_custom_call.1} parent=11 // pred_fallthru
          _
        // Predicated region
        $region49: #{tpu_custom_call.1} parent=11 // pred_check
          %p413 = pneg %p301
        $region50: #{tpu_custom_call.1} parent=11 // pred_check_branch
          %415 = sbr.rel (%p413) target = $region52
        $region51: #{tpu_custom_call.1} parent=11 // pred_region
          _
        $region52: #{tpu_custom_call.1} parent=11 // pred_fallthru
          _
        // Predicated region
        $region53: #{tpu_custom_call.1} parent=11 // pred_check
          %p416 = pneg %p322
        $region54: #{tpu_custom_call.1} parent=11 // pred_check_branch
          %418 = sbr.rel (%p416) target = $region56
        $region55: #{tpu_custom_call.1} parent=11 // pred_region
          _
        $region56: #{tpu_custom_call.1} parent=11 // pred_fallthru
          _
        // Predicated region
        $region57: #{tpu_custom_call.1} parent=11 // pred_check
          %p419 = pneg %p343
        $region58: #{tpu_custom_call.1} parent=11 // pred_check_branch
          %421 = sbr.rel (%p419) target = $region60
        $region59: #{tpu_custom_call.1} parent=11 // pred_region
          _
        $region60: #{tpu_custom_call.1} parent=11 // pred_fallthru
          _
      $region12: #{tpu_custom_call.1} parent=5 // pred_fallthru
        _
      %p422 = scmp.lt.s32.totalorder %s23, 2
      // Predicated region
      $region61: #{tpu_custom_call.1} parent=5 // pred_check
        %p423 = pneg %p422
      $region62: #{tpu_custom_call.1} parent=5 // pred_check_branch
        %425 = sbr.rel (%p423) target = $region64
      $region63: #{tpu_custom_call.1} parent=5 // pred_region
        // Predicated region
        $region65: #{tpu_custom_call.1} parent=63 // pred_check
          %p426 = pneg %p57
        $region66: #{tpu_custom_call.1} parent=63 // pred_check_branch
          %428 = sbr.rel (%p426) target = $region68
        $region67: #{tpu_custom_call.1} parent=63 // pred_region
          %s429 = smul.u32 2, %s31
          %p430 = scmp.lt.s32.totalorder %s30, 1
          %s431 = scalar_select %p430, %s30, 1
          %p432 = scmp.lt.s32.totalorder %s429, 1
          %s433 = scalar_select %p432, %s429, 1
          %s434 = smul.addr %s431, 2
          %s435 = sadd.s32 %s433, %s434
          %s436 = smul.addr %s435, 8
          %s437 = scalar_lea.vmem %s0, %s436
          %s438 = smul.u32 2, %s31
        $region68: #{tpu_custom_call.1} parent=63 // pred_fallthru
          _
        // Predicated region
        $region69: #{tpu_custom_call.1} parent=63 // pred_check
          %p439 = pneg %p85
        $region70: #{tpu_custom_call.1} parent=63 // pred_check_branch
          %441 = sbr.rel (%p439) target = $region72
        $region71: #{tpu_custom_call.1} parent=63 // pred_region
          %s442 = smul.u32 2, %s31
          %p443 = scmp.lt.s32.totalorder %s30, 1
          %s444 = scalar_select %p443, %s30, 1
          %p445 = scmp.lt.s32.totalorder %s442, 1
          %s446 = scalar_select %p445, %s442, 1
          %s447 = smul.addr %s444, 4
          %s448 = sadd.s32 %s446, %s447
          %s449 = smul.addr %s448, 8
          %s450 = scalar_lea.vmem %s1, %s449
          %s451 = smul.u32 2, %s31
        $region72: #{tpu_custom_call.1} parent=63 // pred_fallthru
          _
      $region64: #{tpu_custom_call.1} parent=5 // pred_fallthru
        _
      %p452 = scmp.le.s32.totalorder 1, %s23
      %p453 = scmp.lt.s32.totalorder %s23, 3
      %p454 = pnand %p452, %p453
      %p455 = pneg %p454
      // Predicated region
      $region73: #{tpu_custom_call.1} parent=5 // pred_check
        _
      $region74: #{tpu_custom_call.1} parent=5 // pred_check_branch
        %457 = sbr.rel (%p454) target = $region76
      $region75: #{tpu_custom_call.1} parent=5 // pred_region
        %s458 = ssub.s32 %s23, 1
        %s459 = smul.u32 2, %s33
        %p460 = scmp.lt.s32.totalorder %s32, 1
        %s461 = scalar_select %p460, %s32, 1
        %p462 = scmp.lt.s32.totalorder %s459, 1
        %s463 = scalar_select %p462, %s459, 1
        %s464 = smul.addr %s461, 2
        %s465 = sadd.s32 %s463, %s464
        %s466 = smul.addr %s465, 8
        %s467 = scalar_lea.vmem %s0, %s466
        %p468 = pneg %p63
        %p469 = pneg %p60
        %s470 = smul.u32 2, %s33
        %p471 = scmp.lt.s32.totalorder %s32, 1
        %s472 = scalar_select %p471, %s32, 1
        %p473 = scmp.lt.s32.totalorder %s470, 1
        %s474 = scalar_select %p473, %s470, 1
        %s475 = smul.addr %s472, 4
        %s476 = sadd.s32 %s474, %s475
        %s477 = smul.addr %s476, 8
        %s478 = scalar_lea.vmem %s1, %s477
        %p479 = pneg %p91
        %p480 = pneg %p88
        %p481 = pneg %p112
        %p482 = pneg %p109
        %p483 = pneg %p133
        %p484 = pneg %p130
        %p485 = pneg %p154
        %p486 = pneg %p151
        %p487 = pneg %p175
        %p488 = pneg %p172
        %p489 = pneg %p196
        %p490 = pneg %p193
        %p491 = pneg %p217
        %p492 = pneg %p214
        %p493 = pneg %p238
        %p494 = pneg %p235
        %p495 = pneg %p259
        %p496 = pneg %p256
        %p497 = pneg %p280
        %p498 = pneg %p277
        %p499 = pneg %p301
        %p500 = pneg %p298
        %p501 = pneg %p322
        %p502 = pneg %p319
        %p503 = pneg %p343
        %p504 = pneg %p340
        %p505 = pneg %p371
        %p506 = pneg %p368
        %s507 = sand.u32 %s358, 1
        %s508 = scalar_lea.sflag [#allocation3], %s507
        %s509 = sand.u32 %s358, 1
        %s510 = smul.addr %s509, 32
        %s511 = scalar_lea.vmem [#allocation2], %s510
        %s512 = smul.u32 2, %s33
        %p513 = scmp.lt.s32.totalorder %s32, 1
        %s514 = scalar_select %p513, %s32, 1
        %p515 = scmp.lt.s32.totalorder %s512, 1
        %s516 = scalar_select %p515, %s512, 1
        %s517 = smul.addr %s514, 2
        %s518 = sadd.s32 %s516, %s517
        %s519 = smul.addr %s518, 8
        %s520 = scalar_lea.vmem %s0, %s519
        %s521 = smul.u32 2, %s33
        %s522 = smul.u32 2, %s33
        %p523 = scmp.lt.s32.totalorder %s32, 1
        %s524 = scalar_select %p523, %s32, 1
        %p525 = scmp.lt.s32.totalorder %s522, 1
        %s526 = scalar_select %p525, %s522, 1
        %s527 = smul.addr %s524, 4
        %s528 = sadd.s32 %s526, %s527
        %s529 = smul.addr %s528, 8
        %s530 = scalar_lea.vmem %s1, %s529
        %s531 = smul.u32 2, %s33
        %s532 = smul.u32 2, %s33
        %v534 = vld [vmem:[%s520] sm:$0xff]
        %v535 = vld [vmem:[%s520 + $0x8] sm:$0xff]
        %v536 = vpack.c.bf16 %v534, %v534
        %v537 = vpack.c.bf16 %v535, %v535
        %v538 = vld [vmem:[%s530] sm:$0xff]
        %v539 = vld [vmem:[%s530 + $0x8] sm:$0xff]
        %v540 = vld [vmem:[%s530 + $0x10] sm:$0xff]
        %v541 = vld [vmem:[%s530 + $0x18] sm:$0xff]
        %v542 = vpack.c.bf16 %v540, %v538
        %v543 = vpack.c.bf16 %v541, %v539
        %v544 = vld [vmem:[%s2] sm:$0xf]
        %v545 = vld [vmem:[%s2 + $0x4] sm:$0xf]
        %v546 = vld [vmem:[%s2 + $0x8] sm:$0xf]
        %v547 = vld [vmem:[%s2 + $0xc] sm:$0xf]
        %v548 = vld [vmem:[%s3] sm:$0xf]
        %v549 = vld [vmem:[%s3 + $0x4] sm:$0xf]
        %v550 = vld [vmem:[%s3 + $0x8] sm:$0xf]
        %v551 = vld [vmem:[%s3 + $0xc] sm:$0xf]
        %v556 = vunpack.c.l.b16 %v548
        %v557 = vunpack.c.l.b16 %v549
        %v558 = vunpack.c.l.b16 %v550
        %v559 = vunpack.c.l.b16 %v551
        %v560 = vpack.c.b16 %v557, %v556
        %v561 = vpack.c.b16 %v559, %v558
        %vm562 = vcmask 130048
        %v564 = vsel %vm562, %v560, 0
        %v567 = vsel %vm562, %v561, 0
        %569 = vmatprep.subr.bf16.mxu0 %v543
        %570 = vmatpush1.bf16.msra.mxu0 %v542
        %571 = vmatprep.subr.bf16.mxu0 0
        %572 = vmatpush1.bf16.msra.mxu0 0
        %573 = vmatprep.subr.bf16.mxu0 0
        %574 = vmatpush1.bf16.msra.mxu0 0
        %575 = vmatprep.subr.bf16.mxu0 0
        %576 = vmatpush1.bf16.msra.mxu0 0
        %577 = vmatprep.subr.bf16.mxu0 0
        %578 = vmatpush1.bf16.msra.mxu0 0
        %579 = vmatprep.subr.bf16.mxu0 0
        %580 = vmatpush1.bf16.msra.mxu0 0
        %581 = vmatprep.subr.bf16.mxu0 0
        %582 = vmatpush1.bf16.msra.mxu0 0
        %583 = vmatprep.subr.bf16.mxu0 0
        %584 = vmatpush1.bf16.msra.mxu0 0
        %585 = vmatprep.subr.bf16.mxu0 0
        %586 = vmatpush1.bf16.msra.mxu0 0
        %587 = vmatprep.subr.bf16.mxu0 0
        %588 = vmatpush1.bf16.msra.mxu0 0
        %589 = vmatprep.subr.bf16.mxu0 0
        %590 = vmatpush1.bf16.msra.mxu0 0
        %591 = vmatprep.subr.bf16.mxu0 0
        %592 = vmatpush1.bf16.msra.mxu0 0
        %593 = vmatprep.subr.bf16.mxu0 0
        %594 = vmatpush1.bf16.msra.mxu0 0
        %595 = vmatprep.subr.bf16.mxu0 0
        %596 = vmatpush1.bf16.msra.mxu0 0
        %597 = vmatprep.subr.bf16.mxu0 0
        %598 = vmatpush1.bf16.msra.mxu0 0
        %599 = vmatprep.subr.bf16.mxu0 0
        %600 = vmatpush1.bf16.msra.mxu0 0
        %601 = vmatprep.mubr.bf16.mxu0 0
        %602 = vmatmul.mubr.bf16.gmra.mrb[0].mxu0 %v564
        %v603 = vpop.f32.mrb[0].mxu0
        %v604 = vadd.f32 0.0, %v603
        %v605 = vpop.f32.mrb[0].mxu0
        %v606 = vadd.f32 0.0, %v605
        %v607 = vpop.f32.mrb[0].mxu0
        %v608 = vadd.f32 0.0, %v607
        %v609 = vpop.f32.mrb[0].mxu0
        %v610 = vadd.f32 0.0, %v609
        %611 = vmatprep.mubr.bf16.mxu0 0
        %612 = vmatmul.mubr.bf16.gmra.mrb[0].mxu0 %v567
        %v613 = vpop.f32.mrb[0].mxu0
        %v614 = vadd.f32 0.0, %v613
        %v615 = vpop.f32.mrb[0].mxu0
        %v616 = vadd.f32 0.0, %v615
        %v617 = vpop.f32.mrb[0].mxu0
        %v618 = vadd.f32 0.0, %v617
        %v619 = vpop.f32.mrb[0].mxu0
        %v620 = vadd.f32 0.0, %v619
        %621 = vdwg.mxu0
        %v626 = vunpack.c.l.b16 %v544
        %v627 = vunpack.c.l.b16 %v545
        %v628 = vunpack.c.l.b16 %v546
        %v629 = vunpack.c.l.b16 %v547
        %v630 = vpack.c.b16 %v627, %v626
        %v631 = vpack.c.b16 %v629, %v628
        %vm632 = vcmask 64512
        %v634 = vsel %vm632, %v630, 0
        %v637 = vsel %vm632, %v631, 0
        %vm639 = vcmask 1043456
        %v641 = vsel %vm639, %v536, 0
        %v644 = vsel %vm639, %v537, 0
        %646 = vmatprep.subr.bf16.mxu0 %v644
        %647 = vmatpush1.bf16.msra.mxu0 %v641
        %648 = vmatprep.subr.bf16.mxu0 0
        %649 = vmatpush1.bf16.msra.mxu0 0
        %650 = vmatprep.subr.bf16.mxu0 0
        %651 = vmatpush1.bf16.msra.mxu0 0
        %652 = vmatprep.subr.bf16.mxu0 0
        %653 = vmatpush1.bf16.msra.mxu0 0
        %654 = vmatprep.subr.bf16.mxu0 0
        %655 = vmatpush1.bf16.msra.mxu0 0
        %656 = vmatprep.subr.bf16.mxu0 0
        %657 = vmatpush1.bf16.msra.mxu0 0
        %658 = vmatprep.subr.bf16.mxu0 0
        %659 = vmatpush1.bf16.msra.mxu0 0
        %660 = vmatprep.subr.bf16.mxu0 0
        %661 = vmatpush1.bf16.msra.mxu0 0
        %662 = vmatprep.subr.bf16.mxu0 0
        %663 = vmatpush1.bf16.msra.mxu0 0
        %664 = vmatprep.subr.bf16.mxu0 0
        %665 = vmatpush1.bf16.msra.mxu0 0
        %666 = vmatprep.subr.bf16.mxu0 0
        %667 = vmatpush1.bf16.msra.mxu0 0
        %668 = vmatprep.subr.bf16.mxu0 0
        %669 = vmatpush1.bf16.msra.mxu0 0
        %670 = vmatprep.subr.bf16.mxu0 0
        %671 = vmatpush1.bf16.msra.mxu0 0
        %672 = vmatprep.subr.bf16.mxu0 0
        %673 = vmatpush1.bf16.msra.mxu0 0
        %674 = vmatprep.subr.bf16.mxu0 0
        %675 = vmatpush1.bf16.msra.mxu0 0
        %676 = vmatprep.subr.bf16.mxu0 0
        %677 = vmatpush1.bf16.msra.mxu0 0
        %678 = vmatprep.mubr.bf16.mxu0 0
        %679 = vmatmul.mubr.bf16.gmra.mrb[0].mxu0 %v634
        %v680 = vpop.f32.mrb[0].mxu0
        %v681 = vadd.f32 %v604, %v680
        %v682 = vpop.f32.mrb[0].mxu0
        %v683 = vadd.f32 %v606, %v682
        %v684 = vpop.f32.mrb[0].mxu0
        %v685 = vadd.f32 %v608, %v684
        %v686 = vpop.f32.mrb[0].mxu0
        %v687 = vadd.f32 %v610, %v686
        %688 = vmatprep.mubr.bf16.mxu0 0
        %689 = vmatmul.mubr.bf16.gmra.mrb[0].mxu0 %v637
        %v690 = vpop.f32.mrb[0].mxu0
        %v691 = vadd.f32 %v614, %v690
        %v692 = vpop.f32.mrb[0].mxu0
        %v693 = vadd.f32 %v616, %v692
        %v694 = vpop.f32.mrb[0].mxu0
        %v695 = vadd.f32 %v618, %v694
        %v696 = vpop.f32.mrb[0].mxu0
        %v697 = vadd.f32 %v620, %v696
        %698 = vdwg.mxu0
        %v699 = vld [vmem:[%s10] sm:$0xff]
        %v700 = vld [vmem:[%s10 + $0x8] sm:$0xff]
        %v701 = vld [vmem:[%s10 + $0x10] sm:$0xff]
        %v702 = vld [vmem:[%s10 + $0x18] sm:$0xff]
        %704 = vset.pattern.permute.xlu0 0
        %705 = vperm.xlu0 %704, %v699
        %v706 = vpop.permute.xlu0 %705
        %709 = vset.pattern.permute.xlu0 0
        %710 = vperm.xlu0 %709, %v700
        %v711 = vpop.permute.xlu0 %710
        %714 = vset.pattern.permute.xlu0 0
        %715 = vperm.xlu0 %714, %v701
        %v716 = vpop.permute.xlu0 %715
        %719 = vset.pattern.permute.xlu0 0
        %720 = vperm.xlu0 %719, %v702
        %v721 = vpop.permute.xlu0 %720
        %v723 = vadd.f32 %v681, %v706
        %v724 = vadd.f32 %v683, %v706
        %v725 = vadd.f32 %v685, %v711
        %v726 = vadd.f32 %v687, %v711
        %v727 = vadd.f32 %v691, %v716
        %v728 = vadd.f32 %v693, %v716
        %v729 = vadd.f32 %v695, %v721
        %v730 = vadd.f32 %v697, %v721
        %v731 = vmax.f32 %v723, 0.0
        %v732 = vmax.f32 %v724, 0.0
        %v733 = vmax.f32 %v725, 0.0
        %v734 = vmax.f32 %v726, 0.0
        %v735 = vmax.f32 %v727, 0.0
        %v736 = vmax.f32 %v728, 0.0
        %v737 = vmax.f32 %v729, 0.0
        %v738 = vmax.f32 %v730, 0.0
        %v739 = vpack.c.bf16 %v733, %v731
        %v740 = vpack.c.bf16 %v734, %v732
        %v741 = vpack.c.bf16 %v737, %v735
        %v742 = vpack.c.bf16 %v738, %v736
        %v743 = vld [vmem:[%s4] sm:$0xf]
        %v744 = vld [vmem:[%s4 + $0x4] sm:$0xf]
        %v745 = vld [vmem:[%s4 + $0x8] sm:$0xf]
        %v746 = vld [vmem:[%s4 + $0xc] sm:$0xf]
        %v747 = vld [vmem:[%s5] sm:$0xf]
        %v748 = vld [vmem:[%s5 + $0x4] sm:$0xf]
        %v749 = vld [vmem:[%s5 + $0x8] sm:$0xf]
        %v750 = vld [vmem:[%s5 + $0xc] sm:$0xf]
        %v755 = vunpack.c.l.b16 %v747
        %v756 = vunpack.c.l.b16 %v748
        %v757 = vunpack.c.l.b16 %v749
        %v758 = vunpack.c.l.b16 %v750
        %v759 = vpack.c.b16 %v756, %v755
        %v760 = vpack.c.b16 %v758, %v757
        %v762 = vsel %vm562, %v759, 0
        %v765 = vsel %vm562, %v760, 0
        %767 = vmatprep.subr.bf16.mxu0 %v543
        %768 = vmatpush1.bf16.msra.mxu0 %v542
        %769 = vmatprep.subr.bf16.mxu0 0
        %770 = vmatpush1.bf16.msra.mxu0 0
        %771 = vmatprep.subr.bf16.mxu0 0
        %772 = vmatpush1.bf16.msra.mxu0 0
        %773 = vmatprep.subr.bf16.mxu0 0
        %774 = vmatpush1.bf16.msra.mxu0 0
        %775 = vmatprep.subr.bf16.mxu0 0
        %776 = vmatpush1.bf16.msra.mxu0 0
        %777 = vmatprep.subr.bf16.mxu0 0
        %778 = vmatpush1.bf16.msra.mxu0 0
        %779 = vmatprep.subr.bf16.mxu0 0
        %780 = vmatpush1.bf16.msra.mxu0 0
        %781 = vmatprep.subr.bf16.mxu0 0
        %782 = vmatpush1.bf16.msra.mxu0 0
        %783 = vmatprep.subr.bf16.mxu0 0
        %784 = vmatpush1.bf16.msra.mxu0 0
        %785 = vmatprep.subr.bf16.mxu0 0
        %786 = vmatpush1.bf16.msra.mxu0 0
        %787 = vmatprep.subr.bf16.mxu0 0
        %788 = vmatpush1.bf16.msra.mxu0 0
        %789 = vmatprep.subr.bf16.mxu0 0
        %790 = vmatpush1.bf16.msra.mxu0 0
        %791 = vmatprep.subr.bf16.mxu0 0
        %792 = vmatpush1.bf16.msra.mxu0 0
        %793 = vmatprep.subr.bf16.mxu0 0
        %794 = vmatpush1.bf16.msra.mxu0 0
        %795 = vmatprep.subr.bf16.mxu0 0
        %796 = vmatpush1.bf16.msra.mxu0 0
        %797 = vmatprep.subr.bf16.mxu0 0
        %798 = vmatpush1.bf16.msra.mxu0 0
        %799 = vmatprep.mubr.bf16.mxu0 0
        %800 = vmatmul.mubr.bf16.gmra.mrb[0].mxu0 %v762
        %v801 = vpop.f32.mrb[0].mxu0
        %v802 = vadd.f32 0.0, %v801
        %v803 = vpop.f32.mrb[0].mxu0
        %v804 = vadd.f32 0.0, %v803
        %v805 = vpop.f32.mrb[0].mxu0
        %v806 = vadd.f32 0.0, %v805
        %v807 = vpop.f32.mrb[0].mxu0
        %v808 = vadd.f32 0.0, %v807
        %809 = vmatprep.mubr.bf16.mxu0 0
        %810 = vmatmul.mubr.bf16.gmra.mrb[0].mxu0 %v765
        %v811 = vpop.f32.mrb[0].mxu0
        %v812 = vadd.f32 0.0, %v811
        %v813 = vpop.f32.mrb[0].mxu0
        %v814 = vadd.f32 0.0, %v813
        %v815 = vpop.f32.mrb[0].mxu0
        %v816 = vadd.f32 0.0, %v815
        %v817 = vpop.f32.mrb[0].mxu0
        %v818 = vadd.f32 0.0, %v817
        %819 = vdwg.mxu0
        %v824 = vunpack.c.l.b16 %v743
        %v825 = vunpack.c.l.b16 %v744
        %v826 = vunpack.c.l.b16 %v745
        %v827 = vunpack.c.l.b16 %v746
        %v828 = vpack.c.b16 %v825, %v824
        %v829 = vpack.c.b16 %v827, %v826
        %vm830 = vcmask 261120
        %v832 = vsel %vm830, %v828, 0
        %v835 = vsel %vm830, %v829, 0
        %837 = vmatprep.subr.bf16.mxu0 %v740
        %838 = vmatpush1.bf16.msra.mxu0 %v739
        %839 = vmatprep.subr.bf16.mxu0 %v742
        %840 = vmatpush1.bf16.msra.mxu0 %v741
        %841 = vmatprep.subr.bf16.mxu0 0
        %842 = vmatpush1.bf16.msra.mxu0 0
        %843 = vmatprep.subr.bf16.mxu0 0
        %844 = vmatpush1.bf16.msra.mxu0 0
        %845 = vmatprep.subr.bf16.mxu0 0
        %846 = vmatpush1.bf16.msra.mxu0 0
        %847 = vmatprep.subr.bf16.mxu0 0
        %848 = vmatpush1.bf16.msra.mxu0 0
        %849 = vmatprep.subr.bf16.mxu0 0
        %850 = vmatpush1.bf16.msra.mxu0 0
        %851 = vmatprep.subr.bf16.mxu0 0
        %852 = vmatpush1.bf16.msra.mxu0 0
        %853 = vmatprep.subr.bf16.mxu0 0
        %854 = vmatpush1.bf16.msra.mxu0 0
        %855 = vmatprep.subr.bf16.mxu0 0
        %856 = vmatpush1.bf16.msra.mxu0 0
        %857 = vmatprep.subr.bf16.mxu0 0
        %858 = vmatpush1.bf16.msra.mxu0 0
        %859 = vmatprep.subr.bf16.mxu0 0
        %860 = vmatpush1.bf16.msra.mxu0 0
        %861 = vmatprep.subr.bf16.mxu0 0
        %862 = vmatpush1.bf16.msra.mxu0 0
        %863 = vmatprep.subr.bf16.mxu0 0
        %864 = vmatpush1.bf16.msra.mxu0 0
        %865 = vmatprep.subr.bf16.mxu0 0
        %866 = vmatpush1.bf16.msra.mxu0 0
        %867 = vmatprep.subr.bf16.mxu0 0
        %868 = vmatpush1.bf16.msra.mxu0 0
        %869 = vmatprep.mubr.bf16.mxu0 0
        %870 = vmatmul.mubr.bf16.gmra.mrb[0].mxu0 %v832
        %v871 = vpop.f32.mrb[0].mxu0
        %v872 = vadd.f32 %v802, %v871
        %v873 = vpop.f32.mrb[0].mxu0
        %v874 = vadd.f32 %v804, %v873
        %v875 = vpop.f32.mrb[0].mxu0
        %v876 = vadd.f32 %v806, %v875
        %v877 = vpop.f32.mrb[0].mxu0
        %v878 = vadd.f32 %v808, %v877
        %879 = vmatprep.mubr.bf16.mxu0 0
        %880 = vmatmul.mubr.bf16.gmra.mrb[0].mxu0 %v835
        %v881 = vpop.f32.mrb[0].mxu0
        %v882 = vadd.f32 %v812, %v881
        %v883 = vpop.f32.mrb[0].mxu0
        %v884 = vadd.f32 %v814, %v883
        %v885 = vpop.f32.mrb[0].mxu0
        %v886 = vadd.f32 %v816, %v885
        %v887 = vpop.f32.mrb[0].mxu0
        %v888 = vadd.f32 %v818, %v887
        %889 = vdwg.mxu0
        %v890 = vld [vmem:[%s11] sm:$0xff]
        %v891 = vld [vmem:[%s11 + $0x8] sm:$0xff]
        %v892 = vld [vmem:[%s11 + $0x10] sm:$0xff]
        %v893 = vld [vmem:[%s11 + $0x18] sm:$0xff]
        %895 = vset.pattern.permute.xlu0 0
        %896 = vperm.xlu0 %895, %v890
        %v897 = vpop.permute.xlu0 %896
        %900 = vset.pattern.permute.xlu0 0
        %901 = vperm.xlu0 %900, %v891
        %v902 = vpop.permute.xlu0 %901
        %905 = vset.pattern.permute.xlu0 0
        %906 = vperm.xlu0 %905, %v892
        %v907 = vpop.permute.xlu0 %906
        %910 = vset.pattern.permute.xlu0 0
        %911 = vperm.xlu0 %910, %v893
        %v912 = vpop.permute.xlu0 %911
        %v914 = vadd.f32 %v872, %v897
        %v915 = vadd.f32 %v874, %v897
        %v916 = vadd.f32 %v876, %v902
        %v917 = vadd.f32 %v878, %v902
        %v918 = vadd.f32 %v882, %v907
        %v919 = vadd.f32 %v884, %v907
        %v920 = vadd.f32 %v886, %v912
        %v921 = vadd.f32 %v888, %v912
        %v922 = vmax.f32 %v914, 0.0
        %v923 = vmax.f32 %v915, 0.0
        %v924 = vmax.f32 %v916, 0.0
        %v925 = vmax.f32 %v917, 0.0
        %v926 = vmax.f32 %v918, 0.0
        %v927 = vmax.f32 %v919, 0.0
        %v928 = vmax.f32 %v920, 0.0
        %v929 = vmax.f32 %v921, 0.0
        %v930 = vpack.c.bf16 %v924, %v922
        %v931 = vpack.c.bf16 %v925, %v923
        %v932 = vpack.c.bf16 %v928, %v926
        %v933 = vpack.c.bf16 %v929, %v927
        %v934 = vld [vmem:[%s6] sm:$0xf]
        %v935 = vld [vmem:[%s6 + $0x4] sm:$0xf]
        %v936 = vld [vmem:[%s6 + $0x8] sm:$0xf]
        %v937 = vld [vmem:[%s6 + $0xc] sm:$0xf]
        %v938 = vld [vmem:[%s7] sm:$0xf]
        %v939 = vld [vmem:[%s7 + $0x4] sm:$0xf]
        %v940 = vld [vmem:[%s7 + $0x8] sm:$0xf]
        %v941 = vld [vmem:[%s7 + $0xc] sm:$0xf]
        %v946 = vunpack.c.l.b16 %v938
        %v947 = vunpack.c.l.b16 %v939
        %v948 = vunpack.c.l.b16 %v940
        %v949 = vunpack.c.l.b16 %v941
        %v950 = vpack.c.b16 %v947, %v946
        %v951 = vpack.c.b16 %v949, %v948
        %v953 = vsel %vm562, %v950, 0
        %v956 = vsel %vm562, %v951, 0
        %958 = vmatprep.subr.bf16.mxu0 %v543
        %959 = vmatpush1.bf16.msra.mxu0 %v542
        %960 = vmatprep.subr.bf16.mxu0 0
        %961 = vmatpush1.bf16.msra.mxu0 0
        %962 = vmatprep.subr.bf16.mxu0 0
        %963 = vmatpush1.bf16.msra.mxu0 0
        %964 = vmatprep.subr.bf16.mxu0 0
        %965 = vmatpush1.bf16.msra.mxu0 0
        %966 = vmatprep.subr.bf16.mxu0 0
        %967 = vmatpush1.bf16.msra.mxu0 0
        %968 = vmatprep.subr.bf16.mxu0 0
        %969 = vmatpush1.bf16.msra.mxu0 0
        %970 = vmatprep.subr.bf16.mxu0 0
        %971 = vmatpush1.bf16.msra.mxu0 0
        %972 = vmatprep.subr.bf16.mxu0 0
        %973 = vmatpush1.bf16.msra.mxu0 0
        %974 = vmatprep.subr.bf16.mxu0 0
        %975 = vmatpush1.bf16.msra.mxu0 0
        %976 = vmatprep.subr.bf16.mxu0 0
        %977 = vmatpush1.bf16.msra.mxu0 0
        %978 = vmatprep.subr.bf16.mxu0 0
        %979 = vmatpush1.bf16.msra.mxu0 0
        %980 = vmatprep.subr.bf16.mxu0 0
        %981 = vmatpush1.bf16.msra.mxu0 0
        %982 = vmatprep.subr.bf16.mxu0 0
        %983 = vmatpush1.bf16.msra.mxu0 0
        %984 = vmatprep.subr.bf16.mxu0 0
        %985 = vmatpush1.bf16.msra.mxu0 0
        %986 = vmatprep.subr.bf16.mxu0 0
        %987 = vmatpush1.bf16.msra.mxu0 0
        %988 = vmatprep.subr.bf16.mxu0 0
        %989 = vmatpush1.bf16.msra.mxu0 0
        %990 = vmatprep.mubr.bf16.mxu0 0
        %991 = vmatmul.mubr.bf16.gmra.mrb[0].mxu0 %v953
        %v992 = vpop.f32.mrb[0].mxu0
        %v993 = vadd.f32 0.0, %v992
        %v994 = vpop.f32.mrb[0].mxu0
        %v995 = vadd.f32 0.0, %v994
        %v996 = vpop.f32.mrb[0].mxu0
        %v997 = vadd.f32 0.0, %v996
        %v998 = vpop.f32.mrb[0].mxu0
        %v999 = vadd.f32 0.0, %v998
        %1000 = vmatprep.mubr.bf16.mxu0 0
        %1001 = vmatmul.mubr.bf16.gmra.mrb[0].mxu0 %v956
        %v1002 = vpop.f32.mrb[0].mxu0
        %v1003 = vadd.f32 0.0, %v1002
        %v1004 = vpop.f32.mrb[0].mxu0
        %v1005 = vadd.f32 0.0, %v1004
        %v1006 = vpop.f32.mrb[0].mxu0
        %v1007 = vadd.f32 0.0, %v1006
        %v1008 = vpop.f32.mrb[0].mxu0
        %v1009 = vadd.f32 0.0, %v1008
        %1010 = vdwg.mxu0
        %v1015 = vunpack.c.l.b16 %v934
        %v1016 = vunpack.c.l.b16 %v935
        %v1017 = vunpack.c.l.b16 %v936
        %v1018 = vunpack.c.l.b16 %v937
        %v1019 = vpack.c.b16 %v1016, %v1015
        %v1020 = vpack.c.b16 %v1018, %v1017
        %v1022 = vsel %vm830, %v1019, 0
        %v1025 = vsel %vm830, %v1020, 0
        %1027 = vmatprep.subr.bf16.mxu0 %v931
        %1028 = vmatpush1.bf16.msra.mxu0 %v930
        %1029 = vmatprep.subr.bf16.mxu0 %v933
        %1030 = vmatpush1.bf16.msra.mxu0 %v932
        %1031 = vmatprep.subr.bf16.mxu0 0
        %1032 = vmatpush1.bf16.msra.mxu0 0
        %1033 = vmatprep.subr.bf16.mxu0 0
        %1034 = vmatpush1.bf16.msra.mxu0 0
        %1035 = vmatprep.subr.bf16.mxu0 0
        %1036 = vmatpush1.bf16.msra.mxu0 0
        %1037 = vmatprep.subr.bf16.mxu0 0
        %1038 = vmatpush1.bf16.msra.mxu0 0
        %1039 = vmatprep.subr.bf16.mxu0 0
        %1040 = vmatpush1.bf16.msra.mxu0 0
        %1041 = vmatprep.subr.bf16.mxu0 0
        %1042 = vmatpush1.bf16.msra.mxu0 0
        %1043 = vmatprep.subr.bf16.mxu0 0
        %1044 = vmatpush1.bf16.msra.mxu0 0
        %1045 = vmatprep.subr.bf16.mxu0 0
        %1046 = vmatpush1.bf16.msra.mxu0 0
        %1047 = vmatprep.subr.bf16.mxu0 0
        %1048 = vmatpush1.bf16.msra.mxu0 0
        %1049 = vmatprep.subr.bf16.mxu0 0
        %1050 = vmatpush1.bf16.msra.mxu0 0
        %1051 = vmatprep.subr.bf16.mxu0 0
        %1052 = vmatpush1.bf16.msra.mxu0 0
        %1053 = vmatprep.subr.bf16.mxu0 0
        %1054 = vmatpush1.bf16.msra.mxu0 0
        %1055 = vmatprep.subr.bf16.mxu0 0
        %1056 = vmatpush1.bf16.msra.mxu0 0
        %1057 = vmatprep.subr.bf16.mxu0 0
        %1058 = vmatpush1.bf16.msra.mxu0 0
        %1059 = vmatprep.mubr.bf16.mxu0 0
        %1060 = vmatmul.mubr.bf16.gmra.mrb[0].mxu0 %v1022
        %v1061 = vpop.f32.mrb[0].mxu0
        %v1062 = vadd.f32 %v993, %v1061
        %v1063 = vpop.f32.mrb[0].mxu0
        %v1064 = vadd.f32 %v995, %v1063
        %v1065 = vpop.f32.mrb[0].mxu0
        %v1066 = vadd.f32 %v997, %v1065
        %v1067 = vpop.f32.mrb[0].mxu0
        %v1068 = vadd.f32 %v999, %v1067
        %1069 = vmatprep.mubr.bf16.mxu0 0
        %1070 = vmatmul.mubr.bf16.gmra.mrb[0].mxu0 %v1025
        %v1071 = vpop.f32.mrb[0].mxu0
        %v1072 = vadd.f32 %v1003, %v1071
        %v1073 = vpop.f32.mrb[0].mxu0
        %v1074 = vadd.f32 %v1005, %v1073
        %v1075 = vpop.f32.mrb[0].mxu0
        %v1076 = vadd.f32 %v1007, %v1075
        %v1077 = vpop.f32.mrb[0].mxu0
        %v1078 = vadd.f32 %v1009, %v1077
        %1079 = vdwg.mxu0
        %v1080 = vld [vmem:[%s12] sm:$0xff]
        %v1081 = vld [vmem:[%s12 + $0x8] sm:$0xff]
        %v1082 = vld [vmem:[%s12 + $0x10] sm:$0xff]
        %v1083 = vld [vmem:[%s12 + $0x18] sm:$0xff]
        %1085 = vset.pattern.permute.xlu0 0
        %1086 = vperm.xlu0 %1085, %v1080
        %v1087 = vpop.permute.xlu0 %1086
        %1090 = vset.pattern.permute.xlu0 0
        %1091 = vperm.xlu0 %1090, %v1081
        %v1092 = vpop.permute.xlu0 %1091
        %1095 = vset.pattern.permute.xlu0 0
        %1096 = vperm.xlu0 %1095, %v1082
        %v1097 = vpop.permute.xlu0 %1096
        %1100 = vset.pattern.permute.xlu0 0
        %1101 = vperm.xlu0 %1100, %v1083
        %v1102 = vpop.permute.xlu0 %1101
        %v1104 = vadd.f32 %v1062, %v1087
        %v1105 = vadd.f32 %v1064, %v1087
        %v1106 = vadd.f32 %v1066, %v1092
        %v1107 = vadd.f32 %v1068, %v1092
        %v1108 = vadd.f32 %v1072, %v1097
        %v1109 = vadd.f32 %v1074, %v1097
        %v1110 = vadd.f32 %v1076, %v1102
        %v1111 = vadd.f32 %v1078, %v1102
        %v1112 = vmax.f32 %v1104, 0.0
        %v1113 = vmax.f32 %v1105, 0.0
        %v1114 = vmax.f32 %v1106, 0.0
        %v1115 = vmax.f32 %v1107, 0.0
        %v1116 = vmax.f32 %v1108, 0.0
        %v1117 = vmax.f32 %v1109, 0.0
        %v1118 = vmax.f32 %v1110, 0.0
        %v1119 = vmax.f32 %v1111, 0.0
        %v1120 = vpack.c.bf16 %v1114, %v1112
        %v1121 = vpack.c.bf16 %v1115, %v1113
        %v1122 = vpack.c.bf16 %v1118, %v1116
        %v1123 = vpack.c.bf16 %v1119, %v1117
        %v1124 = vld [vmem:[%s8] sm:$0xf]
        %v1125 = vld [vmem:[%s8 + $0x4] sm:$0xf]
        %v1126 = vld [vmem:[%s9] sm:$0xf]
        %v1127 = vld [vmem:[%s9 + $0x4] sm:$0xf]
        %v1130 = vunpack.c.l.b16 %v1126
        %v1131 = vunpack.c.l.b16 %v1127
        %v1132 = vpack.c.b16 %v1131, %v1130
        %v1134 = vsel %vm562, %v1132, 0
        %1136 = vmatprep.subr.bf16.mxu0 %v543
        %1137 = vmatpush1.bf16.msra.mxu0 %v542
        %1138 = vmatprep.subr.bf16.mxu0 0
        %1139 = vmatpush1.bf16.msra.mxu0 0
        %1140 = vmatprep.subr.bf16.mxu0 0
        %1141 = vmatpush1.bf16.msra.mxu0 0
        %1142 = vmatprep.subr.bf16.mxu0 0
        %1143 = vmatpush1.bf16.msra.mxu0 0
        %1144 = vmatprep.subr.bf16.mxu0 0
        %1145 = vmatpush1.bf16.msra.mxu0 0
        %1146 = vmatprep.subr.bf16.mxu0 0
        %1147 = vmatpush1.bf16.msra.mxu0 0
        %1148 = vmatprep.subr.bf16.mxu0 0
        %1149 = vmatpush1.bf16.msra.mxu0 0
        %1150 = vmatprep.subr.bf16.mxu0 0
        %1151 = vmatpush1.bf16.msra.mxu0 0
        %1152 = vmatprep.subr.bf16.mxu0 0
        %1153 = vmatpush1.bf16.msra.mxu0 0
        %1154 = vmatprep.subr.bf16.mxu0 0
        %1155 = vmatpush1.bf16.msra.mxu0 0
        %1156 = vmatprep.subr.bf16.mxu0 0
        %1157 = vmatpush1.bf16.msra.mxu0 0
        %1158 = vmatprep.subr.bf16.mxu0 0
        %1159 = vmatpush1.bf16.msra.mxu0 0
        %1160 = vmatprep.subr.bf16.mxu0 0
        %1161 = vmatpush1.bf16.msra.mxu0 0
        %1162 = vmatprep.subr.bf16.mxu0 0
        %1163 = vmatpush1.bf16.msra.mxu0 0
        %1164 = vmatprep.subr.bf16.mxu0 0
        %1165 = vmatpush1.bf16.msra.mxu0 0
        %1166 = vmatprep.subr.bf16.mxu0 0
        %1167 = vmatpush1.bf16.msra.mxu0 0
        %1168 = vmatprep.mubr.bf16.mxu0 0
        %1169 = vmatmul.mubr.bf16.gmra.mrb[0].mxu0 %v1134
        %v1170 = vpop.f32.mrb[0].mxu0
        %v1171 = vadd.f32 0.0, %v1170
        %v1172 = vpop.f32.mrb[0].mxu0
        %v1173 = vadd.f32 0.0, %v1172
        %v1174 = vpop.f32.mrb[0].mxu0
        %v1175 = vadd.f32 0.0, %v1174
        %v1176 = vpop.f32.mrb[0].mxu0
        %v1177 = vadd.f32 0.0, %v1176
        %1178 = vdwg.mxu0
        %v1181 = vunpack.c.l.b16 %v1124
        %v1182 = vunpack.c.l.b16 %v1125
        %v1183 = vpack.c.b16 %v1182, %v1181
        %v1185 = vsel %vm830, %v1183, 0
        %1187 = vmatprep.subr.bf16.mxu0 %v1121
        %1188 = vmatpush1.bf16.msra.mxu0 %v1120
        %1189 = vmatprep.subr.bf16.mxu0 %v1123
        %1190 = vmatpush1.bf16.msra.mxu0 %v1122
        %1191 = vmatprep.subr.bf16.mxu0 0
        %1192 = vmatpush1.bf16.msra.mxu0 0
        %1193 = vmatprep.subr.bf16.mxu0 0
        %1194 = vmatpush1.bf16.msra.mxu0 0
        %1195 = vmatprep.subr.bf16.mxu0 0
        %1196 = vmatpush1.bf16.msra.mxu0 0
        %1197 = vmatprep.subr.bf16.mxu0 0
        %1198 = vmatpush1.bf16.msra.mxu0 0
        %1199 = vmatprep.subr.bf16.mxu0 0
        %1200 = vmatpush1.bf16.msra.mxu0 0
        %1201 = vmatprep.subr.bf16.mxu0 0
        %1202 = vmatpush1.bf16.msra.mxu0 0
        %1203 = vmatprep.subr.bf16.mxu0 0
        %1204 = vmatpush1.bf16.msra.mxu0 0
        %1205 = vmatprep.subr.bf16.mxu0 0
        %1206 = vmatpush1.bf16.msra.mxu0 0
        %1207 = vmatprep.subr.bf16.mxu0 0
        %1208 = vmatpush1.bf16.msra.mxu0 0
        %1209 = vmatprep.subr.bf16.mxu0 0
        %1210 = vmatpush1.bf16.msra.mxu0 0
        %1211 = vmatprep.subr.bf16.mxu0 0
        %1212 = vmatpush1.bf16.msra.mxu0 0
        %1213 = vmatprep.subr.bf16.mxu0 0
        %1214 = vmatpush1.bf16.msra.mxu0 0
        %1215 = vmatprep.subr.bf16.mxu0 0
        %1216 = vmatpush1.bf16.msra.mxu0 0
        %1217 = vmatprep.subr.bf16.mxu0 0
        %1218 = vmatpush1.bf16.msra.mxu0 0
        %1219 = vmatprep.mubr.bf16.mxu0 0
        %1220 = vmatmul.mubr.bf16.gmra.mrb[0].mxu0 %v1185
        %v1221 = vpop.f32.mrb[0].mxu0
        %v1222 = vadd.f32 %v1171, %v1221
        %v1223 = vpop.f32.mrb[0].mxu0
        %v1224 = vadd.f32 %v1173, %v1223
        %v1225 = vpop.f32.mrb[0].mxu0
        %v1226 = vadd.f32 %v1175, %v1225
        %v1227 = vpop.f32.mrb[0].mxu0
        %v1228 = vadd.f32 %v1177, %v1227
        %1229 = vdwg.mxu0
        %v1230 = vld [vmem:[%s13] sm:$0xff]
        %v1231 = vld [vmem:[%s13 + $0x8] sm:$0xff]
        %1233 = vset.pattern.permute.xlu0 0
        %1234 = vperm.xlu0 %1233, %v1230
        %v1235 = vpop.permute.xlu0 %1234
        %1238 = vset.pattern.permute.xlu0 0
        %1239 = vperm.xlu0 %1238, %v1231
        %v1240 = vpop.permute.xlu0 %1239
        %v1242 = vadd.f32 %v1222, %v1235
        %v1243 = vadd.f32 %v1224, %v1235
        %v1244 = vadd.f32 %v1226, %v1240
        %v1245 = vadd.f32 %v1228, %v1240
        %1246 = vst [vmem:[%s511] sm:$0xff] %v1242
        %1247 = vst [vmem:[%s511 + $0x8] sm:$0xff] %v1243
        %1248 = vst [vmem:[%s511 + $0x10] sm:$0xff] %v1244
        %1249 = vst [vmem:[%s511 + $0x18] sm:$0xff] %v1245
        %s1250 = sand.u32 %s358, 1
        %s1251 = scalar_lea.sflag [#allocation3], %s1250
        %s1252 = sand.u32 %s358, 1
        %s1253 = smul.addr %s1252, 32
        %s1254 = scalar_lea.vmem [#allocation2], %s1253
        // Predicated region
        $region77: #{tpu_custom_call.1} parent=75 // pred_check
          %p1255 = pneg %p368
        $region78: #{tpu_custom_call.1} parent=75 // pred_check_branch
          %1257 = sbr.rel (%p1255) target = $region80
        $region79: #{tpu_custom_call.1} parent=75 // pred_region
          %s1258 = smul.u32 2, %s33
          %s1260 = ssub.s32 512, 512
          %1261 = vsyncadd %s1251, %s1260
          %s1262 = smul.addr %s32, 4
          %s1263 = sadd.s32 %s1258, %s1262
          %s1264 = smul.addr %s1263, 128
          %s1265 = scalar_lea.hbm %s14, %s1264
          %s1266 = sshll.u32 %s1254, 4
          %s1267 = int_to_ptr.vmem [resolvable:$true] %s1266
          %1272 = dma.vmem_to_hbm [thread:$0]  %s1267, 512, %s1265, %s1251, 256, 256, 16
        $region80: #{tpu_custom_call.1} parent=75 // pred_fallthru
          _
      $region76: #{tpu_custom_call.1} parent=5 // pred_fallthru
        _
      %p1273 = scmp.le.s32.totalorder 2, %s23
      // Predicated region
      $region81: #{tpu_custom_call.1} parent=5 // pred_check
        %p1274 = pneg %p1273
      $region82: #{tpu_custom_call.1} parent=5 // pred_check_branch
        %1276 = sbr.rel (%p1274) target = $region84
      $region83: #{tpu_custom_call.1} parent=5 // pred_region
        %s1277 = ssub.s32 %s23, 2
        // Predicated region
        $region85: #{tpu_custom_call.1} parent=83 // pred_check
          %p1278 = pneg %p374
        $region86: #{tpu_custom_call.1} parent=83 // pred_check_branch
          %1280 = sbr.rel (%p1278) target = $region88
        $region87: #{tpu_custom_call.1} parent=83 // pred_region
          %s1281 = sand.u32 %s359, 1
          %s1282 = scalar_lea.sflag [#allocation3], %s1281
          %s1283 = sand.u32 %s359, 1
          %s1284 = smul.addr %s1283, 32
          %s1285 = scalar_lea.vmem [#allocation2], %s1284
          %1286 = dma.done %s1282, 512
        $region88: #{tpu_custom_call.1} parent=83 // pred_fallthru
          _
      $region84: #{tpu_custom_call.1} parent=5 // pred_fallthru
        _
    $region6: #{tpu_custom_call.1} parent=1 // loop_footer
      %s27 = sadd.s32 1, %s23
    $region7: #{tpu_custom_call.1} parent=1 // loop_footer_branch
      %22 = sbr.rel target = $region3
    $region8: #{tpu_custom_call.1} parent=1 // loop_exit
      _
    %1287 = vsyncpa [#allocation3], 1
    %s1288 = scalar_lea.sflag [#allocation3], 1
    %1289 = vsyncpa %s1288, 1

</llo_original>
